<compile_context>
chip_gen: v7x
topology: tpu7x:2x2x1
jax: 0.10.0
libtpu: 0.0.40
codegen_flags: <defaults>
</compile_context>

<pallas_src>
import functools

import jax
import jax.numpy as jnp
import numpy as np
from jax.experimental import pallas as pl
from jax.experimental.pallas import tpu as pltpu


# ----------------------------------------------------------------------------
# Single fused kernel: Linear+RNN+node attention per path tile, with the
# path-attention / prediction heads executed on the final grid step.
# ----------------------------------------------------------------------------
def _idpath_kernel(emb_ref, lenmask_ref, mask_ref,
                   wc_t_ref, bc_ref, whh_t_ref, bhh_ref, a_node_ref,
                   a_path_ref, wh_t_ref, bh_ref, wo_t_ref, bo_ref,
                   wnh_t_ref, wno_t_ref, bn_ref,
                   nw_ref, head_ref,
                   pemb_acc,
                   *, path_len, tile_paths, batch, path_num, head_width):
    L, TP = path_len, tile_paths
    F = emb_ref.shape[-1]
    E = whh_t_ref.shape[0]
    i = pl.program_id(0)

    # Folded liner + RNN input transform: one matmul for all time steps.
    emb = emb_ref[...].reshape(L * TP, F)                       # (L*TP, F)
    xih = jnp.dot(emb, wc_t_ref[...],
                  preferred_element_type=jnp.float32) + bc_ref[...]

    whh_t = whh_t_ref[...]
    bhh = bhh_ref[...]

    # nn.RNN (tanh), h_0 = 0.  pack/pad_packed semantics reproduced by zeroing
    # outputs at t >= length (lenmask is time-major (L, TP, 1): cheap
    # lane-broadcast, no width-1 lane slicing).
    # TODO(synk): pack_padded_sequence has no direct Pallas equivalent; it is
    # reproduced exactly by this length masking.
    h = jnp.zeros((TP, E), jnp.float32)
    outs = []
    for t in range(L):
        h = jnp.tanh(xih[t * TP:(t + 1) * TP, :]
                     + jnp.dot(h, whh_t, preferred_element_type=jnp.float32)
                     + bhh)
        outs.append(h * lenmask_ref[t])                         # (TP, E)

    # Node-attention scores: ONE matmul over the stacked hidden states.
    h_all = jnp.concatenate(outs, axis=0)                       # (L*TP, E)
    scores = jnp.dot(h_all, a_node_ref[...],
                     preferred_element_type=jnp.float32)        # (L*TP, 1)

    # Masked softmax over time, entirely in (TP, 1) column layout.
    wcols = []
    for t in range(L):
        wt = scores[t * TP:(t + 1) * TP, :]
        wcols.append(jnp.where(mask_ref[t] == 0.0, -1e9, wt))
    m = wcols[0]
    for t in range(1, L):
        m = jnp.maximum(m, wcols[t])
    ecols = [jnp.exp(w - m) for w in wcols]
    denom = ecols[0]
    for t in range(1, L):
        denom = denom + ecols[t]
    inv = pl.reciprocal(denom, approx=False)
    alphas = [e * inv for e in ecols]                           # L x (TP, 1)

    nw_ref[...] = jnp.concatenate(alphas, axis=1)               # (TP, L)

    # Weighted sum over time -> per-path embedding, stashed in persistent VMEM.
    pemb = outs[0] * alphas[0]
    for t in range(1, L):
        pemb = pemb + outs[t] * alphas[t]
    pemb_acc[pl.ds(i * TP, TP), :] = pemb

    # ---- fused head: path attention + prediction, on the last grid step ----
    @pl.when(i == pl.num_programs(0) - 1)
    def _head():
        B, P = batch, path_num
        x = pemb_acc[...]                                       # (B*P, E)
        x3 = x.reshape(B, P, E)

        w2 = jnp.dot(x, a_path_ref[...],
                     preferred_element_type=jnp.float32).reshape(B, P)
        w2 = w2 - jnp.max(w2, axis=1, keepdims=True)
        ew = jnp.exp(w2)
        alpha = ew * pl.reciprocal(jnp.sum(ew, axis=1, keepdims=True),
                                   approx=False)                # (B, P)
        oemb = jnp.sum(x3 * alpha[:, :, None], axis=1)          # (B, E)

        hidden = jnp.dot(oemb, wh_t_ref[...],
                         preferred_element_type=jnp.float32) + bh_ref[...]
        out = jnp.dot(hidden, wo_t_ref[...],
                      preferred_element_type=jnp.float32) + bo_ref[...]  # (B,1)
        sig = 1.0 / (1.0 + jnp.exp(-out))

        # output_linear_new(cat(hidden, out)) split into two matmuls.
        onew = (jnp.dot(hidden, wnh_t_ref[...],
                        preferred_element_type=jnp.float32)
                + jnp.dot(out, wno_t_ref[...],
                          preferred_element_type=jnp.float32)
                + bn_ref[...])                                  # (B, 2)
        onew = onew - jnp.max(onew, axis=1, keepdims=True)
        eo = jnp.exp(onew)
        soft = eo * pl.reciprocal(jnp.sum(eo, axis=1, keepdims=True),
                                  approx=False)

        # Pack all tiny head outputs into one lane-dense slab:
        # [0]=out, [1]=sigmoid, [2:4]=softmax, [4:4+P]=path weights, rest 0.
        pieces = [out, sig, soft, alpha]
        pad_w = head_width - 4 - P
        if pad_w > 0:
            pieces.append(jnp.zeros((B, pad_w), jnp.float32))
        head_ref[...] = jnp.concatenate(pieces, axis=1)


def _pick_tile(bp):
    # MXU-sized path tiles when they divide the work; otherwise one big step.
    for cand in (256, 128):
        if bp % cand == 0:
            return cand
    return bp


# ----------------------------------------------------------------------------
# Wrapper (glue: weight folding/transposes, gather, pallas_call plumbing)
# ----------------------------------------------------------------------------
def idpath_forward(path_feature, lengths, mask, ppi_emd, params, *,
                   tile_paths=None):
    B, P, L = path_feature.shape
    BP = B * P
    F = ppi_emd.shape[1]
    E = params["w_lin"].shape[0]

    TP = _pick_tile(BP) if tile_paths is None else tile_paths
    assert BP % TP == 0
    grid_len = BP // TP
    HW = 128 * ((4 + P + 127) // 128)       # lane-dense packed head width

    # Fold liner() into the RNN input transform (no nonlinearity in between)
    # and pre-transpose every weight so the kernel never calls .T.
    w_comb_t = (params["w_ih"] @ params["w_lin"]).T                  # (F, E)
    b_comb = params["b_lin"] @ params["w_ih"].T + params["b_ih"]     # (1, E)
    whh_t = params["w_hh"].T                                         # (E, E)
    a_node_c = params["a_node"].T                                    # (E, 1)
    a_path_c = params["a_path"].T                                    # (E, 1)
    wh_t = params["w_h"].T                                           # (E, E)
    wo_t = params["w_o"].T                                           # (E, 1)
    wnh_t = params["w_n"][:, :E].T                                   # (E, 2)
    wno_t = params["w_n"][:, E:].T                                   # (1, 2)

    # Embedding gather directly into time-major layout (transpose the small
    # int32 index array, not the gathered tensor).
    pf = path_feature.reshape(BP, L)
    emb_tm = ppi_emd[pf.T].astype(jnp.float32)                       # (L, BP, F)
    lens = lengths.reshape(BP)
    lenmask_tm = (jnp.arange(L)[:, None] < lens[None, :]
                  ).astype(jnp.float32)[:, :, None]                  # (L, BP, 1)
    mask_tm = jnp.transpose(mask.reshape(BP, L)
                            ).astype(jnp.float32)[:, :, None]        # (L, BP, 1)

    kernel = functools.partial(_idpath_kernel, path_len=L, tile_paths=TP,
                               batch=B, path_num=P, head_width=HW)

    const = lambda i: (0, 0)
    nw, head = pl.pallas_call(
        kernel,
        out_shape=(jax.ShapeDtypeStruct((BP, L), jnp.float32),
                   jax.ShapeDtypeStruct((B, HW), jnp.float32)),
        grid_spec=pltpu.PrefetchScalarGridSpec(
            num_scalar_prefetch=0,
            grid=(grid_len,),
            in_specs=[
                pl.BlockSpec((L, TP, F), lambda i: (0, i, 0)),   # embeddings
                pl.BlockSpec((L, TP, 1), lambda i: (0, i, 0)),   # length mask
                pl.BlockSpec((L, TP, 1), lambda i: (0, i, 0)),   # attn mask
                pl.BlockSpec((F, E), const),                     # W_comb^T
                pl.BlockSpec((1, E), const),                     # b_comb
                pl.BlockSpec((E, E), const),                     # W_hh^T
                pl.BlockSpec((1, E), const),                     # b_hh
                pl.BlockSpec((E, 1), const),                     # a_node^T
                pl.BlockSpec((E, 1), const),                     # a_path^T
                pl.BlockSpec((E, E), const),                     # W_h^T
                pl.BlockSpec((1, E), const),                     # b_h
                pl.BlockSpec((E, 1), const),                     # W_o^T
                pl.BlockSpec((1, 1), const),                     # b_o
                pl.BlockSpec((E, 2), const),                     # W_n[:, :E]^T
                pl.BlockSpec((1, 2), const),                     # W_n[:, E:]^T
                pl.BlockSpec((1, 2), const),                     # b_n
            ],
            out_specs=[
                pl.BlockSpec((TP, L), lambda i: (i, 0)),         # node weights
                pl.BlockSpec((B, HW), const),                    # packed head
            ],
            # persistent per-path embeddings (never round-trips HBM)
            scratch_shapes=[pltpu.VMEM((BP, E), jnp.float32)],
        ),
        # head accumulates across the grid axis -> must be "arbitrary".
        compiler_params=pltpu.CompilerParams(
            dimension_semantics=("arbitrary",)),
    )(emb_tm, lenmask_tm, mask_tm,
      w_comb_t, b_comb, whh_t, params["b_hh"], a_node_c,
      a_path_c, wh_t, params["b_h"], wo_t, params["b_o"],
      wnh_t, wno_t, params["b_n"])

    node_weight = nw.reshape(B, P, L)
    out = head[:, 0:1]
    sig = head[:, 1:2]
    soft = head[:, 2:4]
    pw = head[:, 4:4 + P]
    return out, sig, soft, node_weight, pw


# ----------------------------------------------------------------------------
# Pure-JAX reference (mirrors the PyTorch forward exactly, unfolded weights)
# ----------------------------------------------------------------------------
def reference_forward(path_feature, lengths, mask, ppi_emd, params):
    B, P, L = path_feature.shape
    BP = B * P
    E = params["w_lin"].shape[0]
    emb = ppi_emd[path_feature.reshape(BP, L)]                   # (BP, L, F)
    feat = emb @ params["w_lin"].T + params["b_lin"][0]
    xih = feat @ params["w_ih"].T + params["b_ih"][0]
    lens = lengths.reshape(BP)
    h = jnp.zeros((BP, E), jnp.float32)
    outs = []
    for t in range(L):
        h = jnp.tanh(xih[:, t, :] + h @ params["w_hh"].T + params["b_hh"][0])
        outs.append(h * (t < lens).astype(jnp.float32)[:, None])
    lstm_out = jnp.stack(outs, axis=1)                           # (BP, L, E)
    w = jnp.einsum("ble,e->bl", lstm_out, params["a_node"][0])
    w = jnp.where(mask.reshape(BP, L) == 0, -1e9, w)
    alpha = jax.nn.softmax(w, axis=1)
    node_weight = alpha.reshape(B, P, L)
    pemb = (lstm_out * alpha[:, :, None]).sum(axis=1).reshape(B, P, E)
    w2 = jnp.einsum("bpe,e->bp", pemb, params["a_path"][0])
    palpha = jax.nn.softmax(w2, axis=1)
    oemb = (pemb * palpha[:, :, None]).sum(axis=1)
    hidden = oemb @ params["w_h"].T + params["b_h"][0]
    out = hidden @ params["w_o"].T + params["b_o"][0]
    se = jnp.concatenate([hidden, out], axis=1)
    onew = se @ params["w_n"].T + params["b_n"][0]
    return out, jax.nn.sigmoid(out), jax.nn.softmax(onew, axis=1), node_weight, palpha


if __name__ == "__main__":
    B, P, L = 2, 8, 8
    first_dim, emb_dim = 16, 32
    num_nodes = 50

    key = jax.random.PRNGKey(0)
    keys = jax.random.split(key, 16)

    def u(k, shape, scale):
        return jax.random.uniform(k, shape, jnp.float32, -scale, scale)

    s_f = 1.0 / np.sqrt(first_dim)
    s_e = 1.0 / np.sqrt(emb_dim)
    s_n = 1.0 / np.sqrt(emb_dim + 1)
    params = dict(
        w_lin=u(keys[0], (emb_dim, first_dim), s_f),
        b_lin=u(keys[1], (1, emb_dim), s_f),
        w_ih=u(keys[2], (emb_dim, emb_dim), s_e),
        b_ih=u(keys[3], (1, emb_dim), s_e),
        w_hh=u(keys[4], (emb_dim, emb_dim), s_e),
        b_hh=u(keys[5], (1, emb_dim), s_e),
        a_node=u(keys[6], (1, emb_dim), s_e),      # node_attention_linear (no bias)
        a_path=u(keys[7], (1, emb_dim), s_e),      # path_attention_linear (no bias)
        w_h=u(keys[8], (emb_dim, emb_dim), s_e),
        b_h=u(keys[9], (1, emb_dim), s_e),
        w_o=u(keys[10], (1, emb_dim), s_e),
        b_o=u(keys[11], (1, 1), s_e),
        w_n=u(keys[12], (2, emb_dim + 1), s_n),
        b_n=u(keys[13], (1, 2), s_n),
    )
    ppi_emd = jax.random.normal(keys[14], (num_nodes, first_dim), jnp.float32)

    k_pf, k_len = jax.random.split(keys[15])
    path_feature = jax.random.randint(k_pf, (B, P, L), 0, num_nodes, jnp.int32)
    lengths = jax.random.randint(k_len, (B, P), 1, L + 1, jnp.int32)
    mask = (jnp.arange(L)[None, None, :] < lengths[:, :, None]).astype(jnp.float32)

    outs = idpath_forward(path_feature, lengths, mask, ppi_emd, params)
    outs = jax.block_until_ready(outs)

    refs = reference_forward(path_feature, lengths, mask, ppi_emd, params)
    for got, want in zip(outs, refs):
        np.testing.assert_allclose(np.asarray(got), np.asarray(want),
                                   rtol=1e-4, atol=1e-4)

    print("KERNEL_OK")
</pallas_src>

<mosaic_0001>
module attributes {stable_mosaic.version = 11 : i64} {
  func.func @_idpath_kernel(%arg0: i32, %arg1: memref<8x16x16xf32, #tpu.memory_space<vmem>>, %arg2: memref<8x16x1xf32, #tpu.memory_space<vmem>>, %arg3: memref<8x16x1xf32, #tpu.memory_space<vmem>>, %arg4: memref<16x32xf32, #tpu.memory_space<vmem>>, %arg5: memref<1x32xf32, #tpu.memory_space<vmem>>, %arg6: memref<32x32xf32, #tpu.memory_space<vmem>>, %arg7: memref<1x32xf32, #tpu.memory_space<vmem>>, %arg8: memref<32x1xf32, #tpu.memory_space<vmem>>, %arg9: memref<32x1xf32, #tpu.memory_space<vmem>>, %arg10: memref<32x32xf32, #tpu.memory_space<vmem>>, %arg11: memref<1x32xf32, #tpu.memory_space<vmem>>, %arg12: memref<32x1xf32, #tpu.memory_space<vmem>>, %arg13: memref<1x1xf32, #tpu.memory_space<vmem>>, %arg14: memref<32x2xf32, #tpu.memory_space<vmem>>, %arg15: memref<1x2xf32, #tpu.memory_space<vmem>>, %arg16: memref<1x2xf32, #tpu.memory_space<vmem>>, %arg17: memref<16x8xf32, #tpu.memory_space<vmem>>, %arg18: memref<2x128xf32, #tpu.memory_space<vmem>>, %arg19: memref<16x32xf32, #tpu.memory_space<vmem>>) attributes {dimension_semantics = [#tpu.dimension_semantics<arbitrary>], iteration_bounds = array<i64: 1>, scalar_prefetch = 0 : i64, scratch_operands = 1 : i64, tpu.core_type = #tpu.core_type<tc>, window_params = [{transform_indices = @transform_0, window_bounds = array<i64: 8, 16, 16>}, {transform_indices = @transform_1, window_bounds = array<i64: 8, 16, 1>}, {transform_indices = @transform_2, window_bounds = array<i64: 8, 16, 1>}, {pipeline_mode = #tpu.pipeline_mode<synchronous>, transform_indices = @transform_3, window_bounds = array<i64: 16, 32>}, {pipeline_mode = #tpu.pipeline_mode<synchronous>, transform_indices = @transform_4, window_bounds = array<i64: 1, 32>}, {pipeline_mode = #tpu.pipeline_mode<synchronous>, transform_indices = @transform_5, window_bounds = array<i64: 32, 32>}, {pipeline_mode = #tpu.pipeline_mode<synchronous>, transform_indices = @transform_6, window_bounds = array<i64: 1, 32>}, {pipeline_mode = #tpu.pipeline_mode<synchronous>, transform_indices = @transform_7, window_bounds = array<i64: 32, 1>}, {pipeline_mode = #tpu.pipeline_mode<synchronous>, transform_indices = @transform_8, window_bounds = array<i64: 32, 1>}, {pipeline_mode = #tpu.pipeline_mode<synchronous>, transform_indices = @transform_9, window_bounds = array<i64: 32, 32>}, {pipeline_mode = #tpu.pipeline_mode<synchronous>, transform_indices = @transform_10, window_bounds = array<i64: 1, 32>}, {pipeline_mode = #tpu.pipeline_mode<synchronous>, transform_indices = @transform_11, window_bounds = array<i64: 32, 1>}, {pipeline_mode = #tpu.pipeline_mode<synchronous>, transform_indices = @transform_12, window_bounds = array<i64: 1, 1>}, {pipeline_mode = #tpu.pipeline_mode<synchronous>, transform_indices = @transform_13, window_bounds = array<i64: 32, 2>}, {pipeline_mode = #tpu.pipeline_mode<synchronous>, transform_indices = @transform_14, window_bounds = array<i64: 1, 2>}, {pipeline_mode = #tpu.pipeline_mode<synchronous>, transform_indices = @transform_15, window_bounds = array<i64: 1, 2>}, {transform_indices = @transform_16, window_bounds = array<i64: 16, 8>}, {pipeline_mode = #tpu.pipeline_mode<synchronous>, transform_indices = @transform_17, window_bounds = array<i64: 2, 128>}]} {
    %c0 = arith.constant 0 : index
    %c0_0 = arith.constant 0 : index
    %c0_1 = arith.constant 0 : index
    %0 = vector.load %arg1[%c0, %c0_0, %c0_1] : memref<8x16x16xf32, #tpu.memory_space<vmem>>, vector<8x16x16xf32>
    %1 = vector.shape_cast %0 : vector<8x16x16xf32> to vector<128x16xf32>
    %c0_2 = arith.constant 0 : index
    %c0_3 = arith.constant 0 : index
    %2 = vector.load %arg4[%c0_2, %c0_3] : memref<16x32xf32, #tpu.memory_space<vmem>>, vector<16x32xf32>
    %cst = arith.constant dense<0.000000e+00> : vector<128x32xf32>
    %3 = tpu.matmul %1, %2, %cst {dimension_numbers = #tpu.dot_dimension_numbers<[1], [0], [0], [1], [0, 0, 1, 1], [], []>} : vector<128x16xf32>, vector<16x32xf32>, vector<128x32xf32> -> vector<128x32xf32>
    %c0_4 = arith.constant 0 : index
    %c0_5 = arith.constant 0 : index
    %4 = vector.load %arg5[%c0_4, %c0_5] : memref<1x32xf32, #tpu.memory_space<vmem>>, vector<1x32xf32>
    %5 = vector.broadcast %4 : vector<1x32xf32> to vector<128x32xf32>
    %6 = arith.addf %3, %5 : vector<128x32xf32>
    %c0_6 = arith.constant 0 : index
    %c0_7 = arith.constant 0 : index
    %7 = vector.load %arg6[%c0_6, %c0_7] : memref<32x32xf32, #tpu.memory_space<vmem>>, vector<32x32xf32>
    %c0_8 = arith.constant 0 : index
    %c0_9 = arith.constant 0 : index
    %8 = vector.load %arg7[%c0_8, %c0_9] : memref<1x32xf32, #tpu.memory_space<vmem>>, vector<1x32xf32>
    %cst_10 = arith.constant 0.000000e+00 : f32
    %9 = vector.broadcast %cst_10 : f32 to vector<16x32xf32>
    %10 = vector.extract_strided_slice %6 {offsets = [0, 0], sizes = [16, 32], strides = [1, 1]} : vector<128x32xf32> to vector<16x32xf32>
    %cst_11 = arith.constant dense<0.000000e+00> : vector<16x32xf32>
    %11 = tpu.matmul %9, %7, %cst_11 {dimension_numbers = #tpu.dot_dimension_numbers<[1], [0], [0], [1], [0, 0, 1, 1], [], []>} : vector<16x32xf32>, vector<32x32xf32>, vector<16x32xf32> -> vector<16x32xf32>
    %12 = arith.addf %10, %11 : vector<16x32xf32>
    %13 = vector.broadcast %8 : vector<1x32xf32> to vector<16x32xf32>
    %14 = arith.addf %12, %13 : vector<16x32xf32>
    %15 = math.tanh %14 : vector<16x32xf32>
    %c0_12 = arith.constant 0 : index
    %c0_13 = arith.constant 0 : index
    %c0_14 = arith.constant 0 : index
    %16 = vector.load %arg2[%c0_12, %c0_13, %c0_14] : memref<8x16x1xf32, #tpu.memory_space<vmem>>, vector<1x16x1xf32>
    %17 = vector.shape_cast %16 : vector<1x16x1xf32> to vector<16x1xf32>
    %18 = vector.broadcast %17 : vector<16x1xf32> to vector<16x32xf32>
    %19 = arith.mulf %15, %18 : vector<16x32xf32>
    %20 = vector.extract_strided_slice %6 {offsets = [16, 0], sizes = [16, 32], strides = [1, 1]} : vector<128x32xf32> to vector<16x32xf32>
    %cst_15 = arith.constant dense<0.000000e+00> : vector<16x32xf32>
    %21 = tpu.matmul %15, %7, %cst_15 {dimension_numbers = #tpu.dot_dimension_numbers<[1], [0], [0], [1], [0, 0, 1, 1], [], []>} : vector<16x32xf32>, vector<32x32xf32>, vector<16x32xf32> -> vector<16x32xf32>
    %22 = arith.addf %20, %21 : vector<16x32xf32>
    %23 = vector.broadcast %8 : vector<1x32xf32> to vector<16x32xf32>
    %24 = arith.addf %22, %23 : vector<16x32xf32>
    %25 = math.tanh %24 : vector<16x32xf32>
    %c1 = arith.constant 1 : index
    %c0_16 = arith.constant 0 : index
    %c0_17 = arith.constant 0 : index
    %26 = vector.load %arg2[%c1, %c0_16, %c0_17] : memref<8x16x1xf32, #tpu.memory_space<vmem>>, vector<1x16x1xf32>
    %27 = vector.shape_cast %26 : vector<1x16x1xf32> to vector<16x1xf32>
    %28 = vector.broadcast %27 : vector<16x1xf32> to vector<16x32xf32>
    %29 = arith.mulf %25, %28 : vector<16x32xf32>
    %30 = vector.extract_strided_slice %6 {offsets = [32, 0], sizes = [16, 32], strides = [1, 1]} : vector<128x32xf32> to vector<16x32xf32>
    %cst_18 = arith.constant dense<0.000000e+00> : vector<16x32xf32>
    %31 = tpu.matmul %25, %7, %cst_18 {dimension_numbers = #tpu.dot_dimension_numbers<[1], [0], [0], [1], [0, 0, 1, 1], [], []>} : vector<16x32xf32>, vector<32x32xf32>, vector<16x32xf32> -> vector<16x32xf32>
    %32 = arith.addf %30, %31 : vector<16x32xf32>
    %33 = vector.broadcast %8 : vector<1x32xf32> to vector<16x32xf32>
    %34 = arith.addf %32, %33 : vector<16x32xf32>
    %35 = math.tanh %34 : vector<16x32xf32>
    %c2 = arith.constant 2 : index
    %c0_19 = arith.constant 0 : index
    %c0_20 = arith.constant 0 : index
    %36 = vector.load %arg2[%c2, %c0_19, %c0_20] : memref<8x16x1xf32, #tpu.memory_space<vmem>>, vector<1x16x1xf32>
    %37 = vector.shape_cast %36 : vector<1x16x1xf32> to vector<16x1xf32>
    %38 = vector.broadcast %37 : vector<16x1xf32> to vector<16x32xf32>
    %39 = arith.mulf %35, %38 : vector<16x32xf32>
    %40 = vector.extract_strided_slice %6 {offsets = [48, 0], sizes = [16, 32], strides = [1, 1]} : vector<128x32xf32> to vector<16x32xf32>
    %cst_21 = arith.constant dense<0.000000e+00> : vector<16x32xf32>
    %41 = tpu.matmul %35, %7, %cst_21 {dimension_numbers = #tpu.dot_dimension_numbers<[1], [0], [0], [1], [0, 0, 1, 1], [], []>} : vector<16x32xf32>, vector<32x32xf32>, vector<16x32xf32> -> vector<16x32xf32>
    %42 = arith.addf %40, %41 : vector<16x32xf32>
    %43 = vector.broadcast %8 : vector<1x32xf32> to vector<16x32xf32>
    %44 = arith.addf %42, %43 : vector<16x32xf32>
    %45 = math.tanh %44 : vector<16x32xf32>
    %c3 = arith.constant 3 : index
    %c0_22 = arith.constant 0 : index
    %c0_23 = arith.constant 0 : index
    %46 = vector.load %arg2[%c3, %c0_22, %c0_23] : memref<8x16x1xf32, #tpu.memory_space<vmem>>, vector<1x16x1xf32>
    %47 = vector.shape_cast %46 : vector<1x16x1xf32> to vector<16x1xf32>
    %48 = vector.broadcast %47 : vector<16x1xf32> to vector<16x32xf32>
    %49 = arith.mulf %45, %48 : vector<16x32xf32>
    %50 = vector.extract_strided_slice %6 {offsets = [64, 0], sizes = [16, 32], strides = [1, 1]} : vector<128x32xf32> to vector<16x32xf32>
    %cst_24 = arith.constant dense<0.000000e+00> : vector<16x32xf32>
    %51 = tpu.matmul %45, %7, %cst_24 {dimension_numbers = #tpu.dot_dimension_numbers<[1], [0], [0], [1], [0, 0, 1, 1], [], []>} : vector<16x32xf32>, vector<32x32xf32>, vector<16x32xf32> -> vector<16x32xf32>
    %52 = arith.addf %50, %51 : vector<16x32xf32>
    %53 = vector.broadcast %8 : vector<1x32xf32> to vector<16x32xf32>
    %54 = arith.addf %52, %53 : vector<16x32xf32>
    %55 = math.tanh %54 : vector<16x32xf32>
    %c4 = arith.constant 4 : index
    %c0_25 = arith.constant 0 : index
    %c0_26 = arith.constant 0 : index
    %56 = vector.load %arg2[%c4, %c0_25, %c0_26] : memref<8x16x1xf32, #tpu.memory_space<vmem>>, vector<1x16x1xf32>
    %57 = vector.shape_cast %56 : vector<1x16x1xf32> to vector<16x1xf32>
    %58 = vector.broadcast %57 : vector<16x1xf32> to vector<16x32xf32>
    %59 = arith.mulf %55, %58 : vector<16x32xf32>
    %60 = vector.extract_strided_slice %6 {offsets = [80, 0], sizes = [16, 32], strides = [1, 1]} : vector<128x32xf32> to vector<16x32xf32>
    %cst_27 = arith.constant dense<0.000000e+00> : vector<16x32xf32>
    %61 = tpu.matmul %55, %7, %cst_27 {dimension_numbers = #tpu.dot_dimension_numbers<[1], [0], [0], [1], [0, 0, 1, 1], [], []>} : vector<16x32xf32>, vector<32x32xf32>, vector<16x32xf32> -> vector<16x32xf32>
    %62 = arith.addf %60, %61 : vector<16x32xf32>
    %63 = vector.broadcast %8 : vector<1x32xf32> to vector<16x32xf32>
    %64 = arith.addf %62, %63 : vector<16x32xf32>
    %65 = math.tanh %64 : vector<16x32xf32>
    %c5 = arith.constant 5 : index
    %c0_28 = arith.constant 0 : index
    %c0_29 = arith.constant 0 : index
    %66 = vector.load %arg2[%c5, %c0_28, %c0_29] : memref<8x16x1xf32, #tpu.memory_space<vmem>>, vector<1x16x1xf32>
    %67 = vector.shape_cast %66 : vector<1x16x1xf32> to vector<16x1xf32>
    %68 = vector.broadcast %67 : vector<16x1xf32> to vector<16x32xf32>
    %69 = arith.mulf %65, %68 : vector<16x32xf32>
    %70 = vector.extract_strided_slice %6 {offsets = [96, 0], sizes = [16, 32], strides = [1, 1]} : vector<128x32xf32> to vector<16x32xf32>
    %cst_30 = arith.constant dense<0.000000e+00> : vector<16x32xf32>
    %71 = tpu.matmul %65, %7, %cst_30 {dimension_numbers = #tpu.dot_dimension_numbers<[1], [0], [0], [1], [0, 0, 1, 1], [], []>} : vector<16x32xf32>, vector<32x32xf32>, vector<16x32xf32> -> vector<16x32xf32>
    %72 = arith.addf %70, %71 : vector<16x32xf32>
    %73 = vector.broadcast %8 : vector<1x32xf32> to vector<16x32xf32>
    %74 = arith.addf %72, %73 : vector<16x32xf32>
    %75 = math.tanh %74 : vector<16x32xf32>
    %c6 = arith.constant 6 : index
    %c0_31 = arith.constant 0 : index
    %c0_32 = arith.constant 0 : index
    %76 = vector.load %arg2[%c6, %c0_31, %c0_32] : memref<8x16x1xf32, #tpu.memory_space<vmem>>, vector<1x16x1xf32>
    %77 = vector.shape_cast %76 : vector<1x16x1xf32> to vector<16x1xf32>
    %78 = vector.broadcast %77 : vector<16x1xf32> to vector<16x32xf32>
    %79 = arith.mulf %75, %78 : vector<16x32xf32>
    %80 = vector.extract_strided_slice %6 {offsets = [112, 0], sizes = [16, 32], strides = [1, 1]} : vector<128x32xf32> to vector<16x32xf32>
    %cst_33 = arith.constant dense<0.000000e+00> : vector<16x32xf32>
    %81 = tpu.matmul %75, %7, %cst_33 {dimension_numbers = #tpu.dot_dimension_numbers<[1], [0], [0], [1], [0, 0, 1, 1], [], []>} : vector<16x32xf32>, vector<32x32xf32>, vector<16x32xf32> -> vector<16x32xf32>
    %82 = arith.addf %80, %81 : vector<16x32xf32>
    %83 = vector.broadcast %8 : vector<1x32xf32> to vector<16x32xf32>
    %84 = arith.addf %82, %83 : vector<16x32xf32>
    %85 = math.tanh %84 : vector<16x32xf32>
    %c7 = arith.constant 7 : index
    %c0_34 = arith.constant 0 : index
    %c0_35 = arith.constant 0 : index
    %86 = vector.load %arg2[%c7, %c0_34, %c0_35] : memref<8x16x1xf32, #tpu.memory_space<vmem>>, vector<1x16x1xf32>
    %87 = vector.shape_cast %86 : vector<1x16x1xf32> to vector<16x1xf32>
    %88 = vector.broadcast %87 : vector<16x1xf32> to vector<16x32xf32>
    %89 = arith.mulf %85, %88 : vector<16x32xf32>
    %90 = tpu.concatenate %19, %29, %39, %49, %59, %69, %79, %89 in 0 : vector<16x32xf32>, vector<16x32xf32>, vector<16x32xf32>, vector<16x32xf32>, vector<16x32xf32>, vector<16x32xf32>, vector<16x32xf32>, vector<16x32xf32> -> vector<128x32xf32>
    %c0_36 = arith.constant 0 : index
    %c0_37 = arith.constant 0 : index
    %91 = vector.load %arg8[%c0_36, %c0_37] : memref<32x1xf32, #tpu.memory_space<vmem>>, vector<32x1xf32>
    %cst_38 = arith.constant dense<0.000000e+00> : vector<128x1xf32>
    %92 = tpu.matmul %90, %91, %cst_38 {dimension_numbers = #tpu.dot_dimension_numbers<[1], [0], [0], [1], [0, 0, 1, 1], [], []>} : vector<128x32xf32>, vector<32x1xf32>, vector<128x1xf32> -> vector<128x1xf32>
    %93 = vector.extract_strided_slice %92 {offsets = [0, 0], sizes = [16, 1], strides = [1, 1]} : vector<128x1xf32> to vector<16x1xf32>
    %c0_39 = arith.constant 0 : index
    %c0_40 = arith.constant 0 : index
    %c0_41 = arith.constant 0 : index
    %94 = vector.load %arg3[%c0_39, %c0_40, %c0_41] : memref<8x16x1xf32, #tpu.memory_space<vmem>>, vector<1x16x1xf32>
    %95 = vector.shape_cast %94 : vector<1x16x1xf32> to vector<16x1xf32>
    %cst_42 = arith.constant 0.000000e+00 : f32
    %96 = vector.broadcast %cst_42 : f32 to vector<16x1xf32>
    %97 = arith.cmpf oeq, %95, %96 : vector<16x1xf32>
    %cst_43 = arith.constant -1.000000e+09 : f32
    %98 = vector.broadcast %cst_43 : f32 to vector<16x1xf32>
    %99 = arith.select %97, %98, %93 : vector<16x1xi1>, vector<16x1xf32>
    %100 = vector.extract_strided_slice %92 {offsets = [16, 0], sizes = [16, 1], strides = [1, 1]} : vector<128x1xf32> to vector<16x1xf32>
    %c1_44 = arith.constant 1 : index
    %c0_45 = arith.constant 0 : index
    %c0_46 = arith.constant 0 : index
    %101 = vector.load %arg3[%c1_44, %c0_45, %c0_46] : memref<8x16x1xf32, #tpu.memory_space<vmem>>, vector<1x16x1xf32>
    %102 = vector.shape_cast %101 : vector<1x16x1xf32> to vector<16x1xf32>
    %cst_47 = arith.constant 0.000000e+00 : f32
    %103 = vector.broadcast %cst_47 : f32 to vector<16x1xf32>
    %104 = arith.cmpf oeq, %102, %103 : vector<16x1xf32>
    %cst_48 = arith.constant -1.000000e+09 : f32
    %105 = vector.broadcast %cst_48 : f32 to vector<16x1xf32>
    %106 = arith.select %104, %105, %100 : vector<16x1xi1>, vector<16x1xf32>
    %107 = vector.extract_strided_slice %92 {offsets = [32, 0], sizes = [16, 1], strides = [1, 1]} : vector<128x1xf32> to vector<16x1xf32>
    %c2_49 = arith.constant 2 : index
    %c0_50 = arith.constant 0 : index
    %c0_51 = arith.constant 0 : index
    %108 = vector.load %arg3[%c2_49, %c0_50, %c0_51] : memref<8x16x1xf32, #tpu.memory_space<vmem>>, vector<1x16x1xf32>
    %109 = vector.shape_cast %108 : vector<1x16x1xf32> to vector<16x1xf32>
    %cst_52 = arith.constant 0.000000e+00 : f32
    %110 = vector.broadcast %cst_52 : f32 to vector<16x1xf32>
    %111 = arith.cmpf oeq, %109, %110 : vector<16x1xf32>
    %cst_53 = arith.constant -1.000000e+09 : f32
    %112 = vector.broadcast %cst_53 : f32 to vector<16x1xf32>
    %113 = arith.select %111, %112, %107 : vector<16x1xi1>, vector<16x1xf32>
    %114 = vector.extract_strided_slice %92 {offsets = [48, 0], sizes = [16, 1], strides = [1, 1]} : vector<128x1xf32> to vector<16x1xf32>
    %c3_54 = arith.constant 3 : index
    %c0_55 = arith.constant 0 : index
    %c0_56 = arith.constant 0 : index
    %115 = vector.load %arg3[%c3_54, %c0_55, %c0_56] : memref<8x16x1xf32, #tpu.memory_space<vmem>>, vector<1x16x1xf32>
    %116 = vector.shape_cast %115 : vector<1x16x1xf32> to vector<16x1xf32>
    %cst_57 = arith.constant 0.000000e+00 : f32
    %117 = vector.broadcast %cst_57 : f32 to vector<16x1xf32>
    %118 = arith.cmpf oeq, %116, %117 : vector<16x1xf32>
    %cst_58 = arith.constant -1.000000e+09 : f32
    %119 = vector.broadcast %cst_58 : f32 to vector<16x1xf32>
    %120 = arith.select %118, %119, %114 : vector<16x1xi1>, vector<16x1xf32>
    %121 = vector.extract_strided_slice %92 {offsets = [64, 0], sizes = [16, 1], strides = [1, 1]} : vector<128x1xf32> to vector<16x1xf32>
    %c4_59 = arith.constant 4 : index
    %c0_60 = arith.constant 0 : index
    %c0_61 = arith.constant 0 : index
    %122 = vector.load %arg3[%c4_59, %c0_60, %c0_61] : memref<8x16x1xf32, #tpu.memory_space<vmem>>, vector<1x16x1xf32>
    %123 = vector.shape_cast %122 : vector<1x16x1xf32> to vector<16x1xf32>
    %cst_62 = arith.constant 0.000000e+00 : f32
    %124 = vector.broadcast %cst_62 : f32 to vector<16x1xf32>
    %125 = arith.cmpf oeq, %123, %124 : vector<16x1xf32>
    %cst_63 = arith.constant -1.000000e+09 : f32
    %126 = vector.broadcast %cst_63 : f32 to vector<16x1xf32>
    %127 = arith.select %125, %126, %121 : vector<16x1xi1>, vector<16x1xf32>
    %128 = vector.extract_strided_slice %92 {offsets = [80, 0], sizes = [16, 1], strides = [1, 1]} : vector<128x1xf32> to vector<16x1xf32>
    %c5_64 = arith.constant 5 : index
    %c0_65 = arith.constant 0 : index
    %c0_66 = arith.constant 0 : index
    %129 = vector.load %arg3[%c5_64, %c0_65, %c0_66] : memref<8x16x1xf32, #tpu.memory_space<vmem>>, vector<1x16x1xf32>
    %130 = vector.shape_cast %129 : vector<1x16x1xf32> to vector<16x1xf32>
    %cst_67 = arith.constant 0.000000e+00 : f32
    %131 = vector.broadcast %cst_67 : f32 to vector<16x1xf32>
    %132 = arith.cmpf oeq, %130, %131 : vector<16x1xf32>
    %cst_68 = arith.constant -1.000000e+09 : f32
    %133 = vector.broadcast %cst_68 : f32 to vector<16x1xf32>
    %134 = arith.select %132, %133, %128 : vector<16x1xi1>, vector<16x1xf32>
    %135 = vector.extract_strided_slice %92 {offsets = [96, 0], sizes = [16, 1], strides = [1, 1]} : vector<128x1xf32> to vector<16x1xf32>
    %c6_69 = arith.constant 6 : index
    %c0_70 = arith.constant 0 : index
    %c0_71 = arith.constant 0 : index
    %136 = vector.load %arg3[%c6_69, %c0_70, %c0_71] : memref<8x16x1xf32, #tpu.memory_space<vmem>>, vector<1x16x1xf32>
    %137 = vector.shape_cast %136 : vector<1x16x1xf32> to vector<16x1xf32>
    %cst_72 = arith.constant 0.000000e+00 : f32
    %138 = vector.broadcast %cst_72 : f32 to vector<16x1xf32>
    %139 = arith.cmpf oeq, %137, %138 : vector<16x1xf32>
    %cst_73 = arith.constant -1.000000e+09 : f32
    %140 = vector.broadcast %cst_73 : f32 to vector<16x1xf32>
    %141 = arith.select %139, %140, %135 : vector<16x1xi1>, vector<16x1xf32>
    %142 = vector.extract_strided_slice %92 {offsets = [112, 0], sizes = [16, 1], strides = [1, 1]} : vector<128x1xf32> to vector<16x1xf32>
    %c7_74 = arith.constant 7 : index
    %c0_75 = arith.constant 0 : index
    %c0_76 = arith.constant 0 : index
    %143 = vector.load %arg3[%c7_74, %c0_75, %c0_76] : memref<8x16x1xf32, #tpu.memory_space<vmem>>, vector<1x16x1xf32>
    %144 = vector.shape_cast %143 : vector<1x16x1xf32> to vector<16x1xf32>
    %cst_77 = arith.constant 0.000000e+00 : f32
    %145 = vector.broadcast %cst_77 : f32 to vector<16x1xf32>
    %146 = arith.cmpf oeq, %144, %145 : vector<16x1xf32>
    %cst_78 = arith.constant -1.000000e+09 : f32
    %147 = vector.broadcast %cst_78 : f32 to vector<16x1xf32>
    %148 = arith.select %146, %147, %142 : vector<16x1xi1>, vector<16x1xf32>
    %149 = arith.maximumf %99, %106 : vector<16x1xf32>
    %150 = arith.maximumf %149, %113 : vector<16x1xf32>
    %151 = arith.maximumf %150, %120 : vector<16x1xf32>
    %152 = arith.maximumf %151, %127 : vector<16x1xf32>
    %153 = arith.maximumf %152, %134 : vector<16x1xf32>
    %154 = arith.maximumf %153, %141 : vector<16x1xf32>
    %155 = arith.maximumf %154, %148 : vector<16x1xf32>
    %156 = arith.subf %99, %155 : vector<16x1xf32>
    %157 = math.exp %156 : vector<16x1xf32>
    %158 = arith.subf %106, %155 : vector<16x1xf32>
    %159 = math.exp %158 : vector<16x1xf32>
    %160 = arith.subf %113, %155 : vector<16x1xf32>
    %161 = math.exp %160 : vector<16x1xf32>
    %162 = arith.subf %120, %155 : vector<16x1xf32>
    %163 = math.exp %162 : vector<16x1xf32>
    %164 = arith.subf %127, %155 : vector<16x1xf32>
    %165 = math.exp %164 : vector<16x1xf32>
    %166 = arith.subf %134, %155 : vector<16x1xf32>
    %167 = math.exp %166 : vector<16x1xf32>
    %168 = arith.subf %141, %155 : vector<16x1xf32>
    %169 = math.exp %168 : vector<16x1xf32>
    %170 = arith.subf %148, %155 : vector<16x1xf32>
    %171 = math.exp %170 : vector<16x1xf32>
    %172 = arith.addf %157, %159 : vector<16x1xf32>
    %173 = arith.addf %172, %161 : vector<16x1xf32>
    %174 = arith.addf %173, %163 : vector<16x1xf32>
    %175 = arith.addf %174, %165 : vector<16x1xf32>
    %176 = arith.addf %175, %167 : vector<16x1xf32>
    %177 = arith.addf %176, %169 : vector<16x1xf32>
    %178 = arith.addf %177, %171 : vector<16x1xf32>
    %179 = tpu.reciprocal %178 : vector<16x1xf32> -> vector<16x1xf32>
    %180 = arith.mulf %157, %179 : vector<16x1xf32>
    %181 = arith.mulf %159, %179 : vector<16x1xf32>
    %182 = arith.mulf %161, %179 : vector<16x1xf32>
    %183 = arith.mulf %163, %179 : vector<16x1xf32>
    %184 = arith.mulf %165, %179 : vector<16x1xf32>
    %185 = arith.mulf %167, %179 : vector<16x1xf32>
    %186 = arith.mulf %169, %179 : vector<16x1xf32>
    %187 = arith.mulf %171, %179 : vector<16x1xf32>
    %188 = tpu.concatenate %180, %181, %182, %183, %184, %185, %186, %187 in 1 : vector<16x1xf32>, vector<16x1xf32>, vector<16x1xf32>, vector<16x1xf32>, vector<16x1xf32>, vector<16x1xf32>, vector<16x1xf32>, vector<16x1xf32> -> vector<16x8xf32>
    %c0_79 = arith.constant 0 : index
    %c0_80 = arith.constant 0 : index
    %189 = vector.load %arg17[%c0_79, %c0_80] : memref<16x8xf32, #tpu.memory_space<vmem>>, vector<16x8xf32>
    tpu.vector_store %arg17[%c0_79, %c0_80], %188 {strides = array<i32>} : memref<16x8xf32, #tpu.memory_space<vmem>>, vector<16x8xf32>,
    %190 = vector.broadcast %180 : vector<16x1xf32> to vector<16x32xf32>
    %191 = arith.mulf %19, %190 : vector<16x32xf32>
    %192 = vector.broadcast %181 : vector<16x1xf32> to vector<16x32xf32>
    %193 = arith.mulf %29, %192 : vector<16x32xf32>
    %194 = arith.addf %191, %193 : vector<16x32xf32>
    %195 = vector.broadcast %182 : vector<16x1xf32> to vector<16x32xf32>
    %196 = arith.mulf %39, %195 : vector<16x32xf32>
    %197 = arith.addf %194, %196 : vector<16x32xf32>
    %198 = vector.broadcast %183 : vector<16x1xf32> to vector<16x32xf32>
    %199 = arith.mulf %49, %198 : vector<16x32xf32>
    %200 = arith.addf %197, %199 : vector<16x32xf32>
    %201 = vector.broadcast %184 : vector<16x1xf32> to vector<16x32xf32>
    %202 = arith.mulf %59, %201 : vector<16x32xf32>
    %203 = arith.addf %200, %202 : vector<16x32xf32>
    %204 = vector.broadcast %185 : vector<16x1xf32> to vector<16x32xf32>
    %205 = arith.mulf %69, %204 : vector<16x32xf32>
    %206 = arith.addf %203, %205 : vector<16x32xf32>
    %207 = vector.broadcast %186 : vector<16x1xf32> to vector<16x32xf32>
    %208 = arith.mulf %79, %207 : vector<16x32xf32>
    %209 = arith.addf %206, %208 : vector<16x32xf32>
    %210 = vector.broadcast %187 : vector<16x1xf32> to vector<16x32xf32>
    %211 = arith.mulf %89, %210 : vector<16x32xf32>
    %212 = arith.addf %209, %211 : vector<16x32xf32>
    %c16_i32 = arith.constant 16 : i32
    %213 = arith.muli %arg0, %c16_i32 : i32
    %214 = arith.index_cast %213 : i32 to index
    %c0_81 = arith.constant 0 : index
    %215 = vector.load %arg19[%214, %c0_81] : memref<16x32xf32, #tpu.memory_space<vmem>>, vector<16x32xf32>
    tpu.vector_store %arg19[%214, %c0_81], %212 {strides = array<i32>} : memref<16x32xf32, #tpu.memory_space<vmem>>, vector<16x32xf32>,
    %c0_i32 = arith.constant 0 : i32
    %216 = arith.cmpi eq, %arg0, %c0_i32 : i32
    %217 = arith.extui %216 : i1 to i32
    %c0_i32_82 = arith.constant 0 : i32
    %218 = arith.cmpi ne, %217, %c0_i32_82 : i32
    scf.if %218 {
      %c0_83 = arith.constant 0 : index
      %c0_84 = arith.constant 0 : index
      %219 = vector.load %arg19[%c0_83, %c0_84] : memref<16x32xf32, #tpu.memory_space<vmem>>, vector<16x32xf32>
      %220 = vector.shape_cast %219 : vector<16x32xf32> to vector<2x8x32xf32>
      %c0_85 = arith.constant 0 : index
      %c0_86 = arith.constant 0 : index
      %221 = vector.load %arg9[%c0_85, %c0_86] : memref<32x1xf32, #tpu.memory_space<vmem>>, vector<32x1xf32>
      %cst_87 = arith.constant dense<0.000000e+00> : vector<16x1xf32>
      %222 = tpu.matmul %219, %221, %cst_87 {dimension_numbers = #tpu.dot_dimension_numbers<[1], [0], [0], [1], [0, 0, 1, 1], [], []>} : vector<16x32xf32>, vector<32x1xf32>, vector<16x1xf32> -> vector<16x1xf32>
      %223 = vector.shape_cast %222 : vector<16x1xf32> to vector<2x8xf32>
      %cst_88 = arith.constant dense<0xFF800000> : vector<2xf32>
      %224 = vector.multi_reduction <maximumf>, %223, %cst_88 [1] : vector<2x8xf32> to vector<2xf32>
      %225 = vector.shape_cast %224 : vector<2xf32> to vector<2x1xf32>
      %226 = vector.broadcast %225 : vector<2x1xf32> to vector<2x8xf32>
      %227 = arith.subf %223, %226 : vector<2x8xf32>
      %228 = math.exp %227 : vector<2x8xf32>
      %cst_89 = arith.constant dense<0.000000e+00> : vector<2xf32>
      %229 = vector.multi_reduction <add>, %228, %cst_89 [1] : vector<2x8xf32> to vector<2xf32>
      %230 = vector.shape_cast %229 : vector<2xf32> to vector<2x1xf32>
      %231 = tpu.reciprocal %230 : vector<2x1xf32> -> vector<2x1xf32>
      %232 = vector.broadcast %231 : vector<2x1xf32> to vector<2x8xf32>
      %233 = arith.mulf %228, %232 : vector<2x8xf32>
      %234 = vector.shape_cast %233 : vector<2x8xf32> to vector<2x8x1xf32>
      %235 = vector.broadcast %234 : vector<2x8x1xf32> to vector<2x8x32xf32>
      %236 = arith.mulf %220, %235 : vector<2x8x32xf32>
      %cst_90 = arith.constant dense<0.000000e+00> : vector<2x32xf32>
      %237 = vector.multi_reduction <add>, %236, %cst_90 [1] : vector<2x8x32xf32> to vector<2x32xf32>
      %c0_91 = arith.constant 0 : index
      %c0_92 = arith.constant 0 : index
      %238 = vector.load %arg10[%c0_91, %c0_92] : memref<32x32xf32, #tpu.memory_space<vmem>>, vector<32x32xf32>
      %cst_93 = arith.constant dense<0.000000e+00> : vector<2x32xf32>
      %239 = tpu.matmul %237, %238, %cst_93 {dimension_numbers = #tpu.dot_dimension_numbers<[1], [0], [0], [1], [0, 0, 1, 1], [], []>} : vector<2x32xf32>, vector<32x32xf32>, vector<2x32xf32> -> vector<2x32xf32>
      %c0_94 = arith.constant 0 : index
      %c0_95 = arith.constant 0 : index
      %240 = vector.load %arg11[%c0_94, %c0_95] : memref<1x32xf32, #tpu.memory_space<vmem>>, vector<1x32xf32>
      %241 = vector.broadcast %240 : vector<1x32xf32> to vector<2x32xf32>
      %242 = arith.addf %239, %241 : vector<2x32xf32>
      %c0_96 = arith.constant 0 : index
      %c0_97 = arith.constant 0 : index
      %243 = vector.load %arg12[%c0_96, %c0_97] : memref<32x1xf32, #tpu.memory_space<vmem>>, vector<32x1xf32>
      %cst_98 = arith.constant dense<0.000000e+00> : vector<2x1xf32>
      %244 = tpu.matmul %242, %243, %cst_98 {dimension_numbers = #tpu.dot_dimension_numbers<[1], [0], [0], [1], [0, 0, 1, 1], [], []>} : vector<2x32xf32>, vector<32x1xf32>, vector<2x1xf32> -> vector<2x1xf32>
      %c0_99 = arith.constant 0 : index
      %c0_100 = arith.constant 0 : index
      %245 = vector.load %arg13[%c0_99, %c0_100] : memref<1x1xf32, #tpu.memory_space<vmem>>, vector<1x1xf32>
      %246 = vector.broadcast %245 : vector<1x1xf32> to vector<2x1xf32>
      %247 = arith.addf %244, %246 : vector<2x1xf32>
      %cst_101 = arith.constant 0.000000e+00 : f32
      %248 = vector.broadcast %cst_101 : f32 to vector<2x1xf32>
      %249 = arith.subf %248, %247 : vector<2x1xf32>
      %250 = math.exp %249 : vector<2x1xf32>
      %cst_102 = arith.constant 1.000000e+00 : f32
      %251 = vector.broadcast %cst_102 : f32 to vector<2x1xf32>
      %252 = arith.addf %251, %250 : vector<2x1xf32>
      %cst_103 = arith.constant 1.000000e+00 : f32
      %253 = vector.broadcast %cst_103 : f32 to vector<2x1xf32>
      %254 = arith.divf %253, %252 : vector<2x1xf32>
      %c0_104 = arith.constant 0 : index
      %c0_105 = arith.constant 0 : index
      %255 = vector.load %arg14[%c0_104, %c0_105] : memref<32x2xf32, #tpu.memory_space<vmem>>, vector<32x2xf32>
      %cst_106 = arith.constant dense<0.000000e+00> : vector<2x2xf32>
      %256 = tpu.matmul %242, %255, %cst_106 {dimension_numbers = #tpu.dot_dimension_numbers<[1], [0], [0], [1], [0, 0, 1, 1], [], []>} : vector<2x32xf32>, vector<32x2xf32>, vector<2x2xf32> -> vector<2x2xf32>
      %c0_107 = arith.constant 0 : index
      %c0_108 = arith.constant 0 : index
      %257 = vector.load %arg15[%c0_107, %c0_108] : memref<1x2xf32, #tpu.memory_space<vmem>>, vector<1x2xf32>
      %cst_109 = arith.constant dense<0.000000e+00> : vector<2x2xf32>
      %258 = tpu.matmul %247, %257, %cst_109 {dimension_numbers = #tpu.dot_dimension_numbers<[1], [0], [0], [1], [0, 0, 1, 1], [], []>} : vector<2x1xf32>, vector<1x2xf32>, vector<2x2xf32> -> vector<2x2xf32>
      %259 = arith.addf %256, %258 : vector<2x2xf32>
      %c0_110 = arith.constant 0 : index
      %c0_111 = arith.constant 0 : index
      %260 = vector.load %arg16[%c0_110, %c0_111] : memref<1x2xf32, #tpu.memory_space<vmem>>, vector<1x2xf32>
      %261 = vector.broadcast %260 : vector<1x2xf32> to vector<2x2xf32>
      %262 = arith.addf %259, %261 : vector<2x2xf32>
      %cst_112 = arith.constant dense<0xFF800000> : vector<2xf32>
      %263 = vector.multi_reduction <maximumf>, %262, %cst_112 [1] : vector<2x2xf32> to vector<2xf32>
      %264 = vector.shape_cast %263 : vector<2xf32> to vector<2x1xf32>
      %265 = vector.broadcast %264 : vector<2x1xf32> to vector<2x2xf32>
      %266 = arith.subf %262, %265 : vector<2x2xf32>
      %267 = math.exp %266 : vector<2x2xf32>
      %cst_113 = arith.constant dense<0.000000e+00> : vector<2xf32>
      %268 = vector.multi_reduction <add>, %267, %cst_113 [1] : vector<2x2xf32> to vector<2xf32>
      %269 = vector.shape_cast %268 : vector<2xf32> to vector<2x1xf32>
      %270 = tpu.reciprocal %269 : vector<2x1xf32> -> vector<2x1xf32>
      %271 = vector.broadcast %270 : vector<2x1xf32> to vector<2x2xf32>
      %272 = arith.mulf %267, %271 : vector<2x2xf32>
      %cst_114 = arith.constant 0.000000e+00 : f32
      %273 = vector.broadcast %cst_114 : f32 to vector<2x116xf32>
      %274 = tpu.concatenate %247, %254, %272, %233, %273 in 1 : vector<2x1xf32>, vector<2x1xf32>, vector<2x2xf32>, vector<2x8xf32>, vector<2x116xf32> -> vector<2x128xf32>
      %c0_115 = arith.constant 0 : index
      %c0_116 = arith.constant 0 : index
      %275 = vector.load %arg18[%c0_115, %c0_116] : memref<2x128xf32, #tpu.memory_space<vmem>>, vector<2x128xf32>
      tpu.vector_store %arg18[%c0_115, %c0_116], %274 {strides = array<i32>} : memref<2x128xf32, #tpu.memory_space<vmem>>, vector<2x128xf32>,
    } else {
    }
    return
  }
  func.func @transform_0(%arg0: i32) -> (i32, i32, i32) {
    %c0_i32 = arith.constant 0 : i32
    %c0_i32_0 = arith.constant 0 : i32
    %c0_i32_1 = arith.constant 0 : i32
    return %c0_i32, %arg0, %c0_i32_0 : i32, i32, i32
  }
  func.func @transform_1(%arg0: i32) -> (i32, i32, i32) {
    %c0_i32 = arith.constant 0 : i32
    %c0_i32_0 = arith.constant 0 : i32
    %c0_i32_1 = arith.constant 0 : i32
    return %c0_i32, %arg0, %c0_i32_0 : i32, i32, i32
  }
  func.func @transform_2(%arg0: i32) -> (i32, i32, i32) {
    %c0_i32 = arith.constant 0 : i32
    %c0_i32_0 = arith.constant 0 : i32
    %c0_i32_1 = arith.constant 0 : i32
    return %c0_i32, %arg0, %c0_i32_0 : i32, i32, i32
  }
  func.func @transform_3(%arg0: i32) -> (i32, i32) {
    %c0_i32 = arith.constant 0 : i32
    %c0_i32_0 = arith.constant 0 : i32
    %c0_i32_1 = arith.constant 0 : i32
    return %c0_i32, %c0_i32_0 : i32, i32
  }
  func.func @transform_4(%arg0: i32) -> (i32, i32) {
    %c0_i32 = arith.constant 0 : i32
    %c0_i32_0 = arith.constant 0 : i32
    %c0_i32_1 = arith.constant 0 : i32
    return %c0_i32, %c0_i32_0 : i32, i32
  }
  func.func @transform_5(%arg0: i32) -> (i32, i32) {
    %c0_i32 = arith.constant 0 : i32
    %c0_i32_0 = arith.constant 0 : i32
    %c0_i32_1 = arith.constant 0 : i32
    return %c0_i32, %c0_i32_0 : i32, i32
  }
  func.func @transform_6(%arg0: i32) -> (i32, i32) {
    %c0_i32 = arith.constant 0 : i32
    %c0_i32_0 = arith.constant 0 : i32
    %c0_i32_1 = arith.constant 0 : i32
    return %c0_i32, %c0_i32_0 : i32, i32
  }
  func.func @transform_7(%arg0: i32) -> (i32, i32) {
    %c0_i32 = arith.constant 0 : i32
    %c0_i32_0 = arith.constant 0 : i32
    %c0_i32_1 = arith.constant 0 : i32
    return %c0_i32, %c0_i32_0 : i32, i32
  }
  func.func @transform_8(%arg0: i32) -> (i32, i32) {
    %c0_i32 = arith.constant 0 : i32
    %c0_i32_0 = arith.constant 0 : i32
    %c0_i32_1 = arith.constant 0 : i32
    return %c0_i32, %c0_i32_0 : i32, i32
  }
  func.func @transform_9(%arg0: i32) -> (i32, i32) {
    %c0_i32 = arith.constant 0 : i32
    %c0_i32_0 = arith.constant 0 : i32
    %c0_i32_1 = arith.constant 0 : i32
    return %c0_i32, %c0_i32_0 : i32, i32
  }
  func.func @transform_10(%arg0: i32) -> (i32, i32) {
    %c0_i32 = arith.constant 0 : i32
    %c0_i32_0 = arith.constant 0 : i32
    %c0_i32_1 = arith.constant 0 : i32
    return %c0_i32, %c0_i32_0 : i32, i32
  }
  func.func @transform_11(%arg0: i32) -> (i32, i32) {
    %c0_i32 = arith.constant 0 : i32
    %c0_i32_0 = arith.constant 0 : i32
    %c0_i32_1 = arith.constant 0 : i32
    return %c0_i32, %c0_i32_0 : i32, i32
  }
  func.func @transform_12(%arg0: i32) -> (i32, i32) {
    %c0_i32 = arith.constant 0 : i32
    %c0_i32_0 = arith.constant 0 : i32
    %c0_i32_1 = arith.constant 0 : i32
    return %c0_i32, %c0_i32_0 : i32, i32
  }
  func.func @transform_13(%arg0: i32) -> (i32, i32) {
    %c0_i32 = arith.constant 0 : i32
    %c0_i32_0 = arith.constant 0 : i32
    %c0_i32_1 = arith.constant 0 : i32
    return %c0_i32, %c0_i32_0 : i32, i32
  }
  func.func @transform_14(%arg0: i32) -> (i32, i32) {
    %c0_i32 = arith.constant 0 : i32
    %c0_i32_0 = arith.constant 0 : i32
    %c0_i32_1 = arith.constant 0 : i32
    return %c0_i32, %c0_i32_0 : i32, i32
  }
  func.func @transform_15(%arg0: i32) -> (i32, i32) {
    %c0_i32 = arith.constant 0 : i32
    %c0_i32_0 = arith.constant 0 : i32
    %c0_i32_1 = arith.constant 0 : i32
    return %c0_i32, %c0_i32_0 : i32, i32
  }
  func.func @transform_16(%arg0: i32) -> (i32, i32) {
    %c0_i32 = arith.constant 0 : i32
    %c0_i32_0 = arith.constant 0 : i32
    return %arg0, %c0_i32 : i32, i32
  }
  func.func @transform_17(%arg0: i32) -> (i32, i32) {
    %c0_i32 = arith.constant 0 : i32
    %c0_i32_0 = arith.constant 0 : i32
    %c0_i32_1 = arith.constant 0 : i32
    return %c0_i32, %c0_i32_0 : i32, i32
  }
}

</mosaic_0001>

<llo_original>
// kernel: tpu_custom_call.1
$region0: #{tpu_custom_call.1}
  #allocation0 [shape = 'u32[]', space=smem, size = 0x4, offset = 0x4, fixed_abs, tag = 'smem constant byte address 0x4 - core index']
  #allocation1 [shape = 'u32[144,128]{1,0:T(1,128)}', space=vmem, size = 0x12000, scoped, tag = 'internal scratch']
  #allocation2 [shape = 'f32[16,32]{1,0:T(8,128)}', space=vmem, size = 0x2000, scoped, tag = 'scratch operand']
  #allocation3 [shape = 'f32[1,1]{1,0:T(1,128)S(1)}', space=vmem, size = 0x200, scoped, tag = 'scoped memory for tpu_custom_call.1']
  %s0 = inlined_call_operand.vmem [shape: f32[8,16,16], index: 0, kind: input, shape index: {}]
  %s1 = inlined_call_operand.vmem [shape: f32[8,16,1], index: 1, kind: input, shape index: {}]
  %s2 = inlined_call_operand.vmem [shape: f32[8,16,1], index: 2, kind: input, shape index: {}]
  %s3 = inlined_call_operand.vmem [shape: f32[16,32], index: 3, kind: input, shape index: {}]
  %s4 = inlined_call_operand.vmem [shape: f32[1,32], index: 4, kind: input, shape index: {}]
  %s5 = inlined_call_operand.vmem [shape: f32[32,32], index: 5, kind: input, shape index: {}]
  %s6 = inlined_call_operand.vmem [shape: f32[1,32], index: 6, kind: input, shape index: {}]
  %s7 = inlined_call_operand.vmem [shape: f32[32,1], index: 7, kind: input, shape index: {}]
  %s8 = inlined_call_operand.vmem [shape: f32[32,1], index: 8, kind: input, shape index: {}]
  %s9 = inlined_call_operand.vmem [shape: f32[32,32], index: 9, kind: input, shape index: {}]
  %s10 = inlined_call_operand.vmem [shape: f32[1,32], index: 10, kind: input, shape index: {}]
  %s11 = inlined_call_operand.vmem [shape: f32[32,1], index: 11, kind: input, shape index: {}]
  %s12 = inlined_call_operand.<no memory space> [shape: f32[1,1], index: 12, kind: input, shape index: {}]
  %s13 = inlined_call_operand.vmem [shape: f32[32,2], index: 13, kind: input, shape index: {}]
  %s14 = inlined_call_operand.vmem [shape: f32[1,2], index: 14, kind: input, shape index: {}]
  %s15 = inlined_call_operand.vmem [shape: f32[1,2], index: 15, kind: input, shape index: {}]
  %s16 = inlined_call_operand.vmem [shape: f32[16,8], index: 16, kind: output, shape index: {0}]
  %s17 = inlined_call_operand.hbm [shape: f32[2,128], index: 17, kind: output, shape index: {1}]
  %18 = xla_tuple %s16, %s17
  %s19 = sld [smem:[#allocation0]]
  $region86: #{tpu_custom_call.1} parent=0
    _
  %s21 = ssub.s32 1, %s19
  %s22 = scalar_select 0, %s21, %s19
  %v23 = vstv %s12
  %24 = vst [vmem:[#allocation3] sm:$0x1] %v23
  $region1: #{tpu_custom_call.1} parent=0
    #allocation4 [shape = 'u8[1024]{0}', space=vmem, size = 0x400, scoped, tag = 'output window, operand 1, single buffered']
    #allocation5 [shape = 's32[1]{0}', space=sflag, size = 0x4, scoped, tag = 'scoped memory for tpu_custom_call.1']
    %25 = vsyncpa [#allocation5], 0
    // Predicated region
    $region2: #{tpu_custom_call.1} parent=1 // pred_check
      _
    $region3: #{tpu_custom_call.1} parent=1 // pred_check_branch
      %27 = sbr.rel (0) target = $region5
    $region4: #{tpu_custom_call.1} parent=1 // pred_region
      _
    $region5: #{tpu_custom_call.1} parent=1 // pred_fallthru
      _
    // Predicated region
    $region6: #{tpu_custom_call.1} parent=1 // pred_check
      _
    $region7: #{tpu_custom_call.1} parent=1 // pred_check_branch
      %29 = sbr.rel (0) target = $region9
    $region8: #{tpu_custom_call.1} parent=1 // pred_region
      _
    $region9: #{tpu_custom_call.1} parent=1 // pred_fallthru
      _
    // Predicated region
    $region10: #{tpu_custom_call.1} parent=1 // pred_check
      _
    $region11: #{tpu_custom_call.1} parent=1 // pred_check_branch
      %31 = sbr.rel (0) target = $region13
    $region12: #{tpu_custom_call.1} parent=1 // pred_region
      _
    $region13: #{tpu_custom_call.1} parent=1 // pred_fallthru
      _
    // Predicated region
    $region14: #{tpu_custom_call.1} parent=1 // pred_check
      _
    $region15: #{tpu_custom_call.1} parent=1 // pred_check_branch
      %33 = sbr.rel (0) target = $region17
    $region16: #{tpu_custom_call.1} parent=1 // pred_region
      _
    $region17: #{tpu_custom_call.1} parent=1 // pred_fallthru
      _
    // Predicated region
    $region18: #{tpu_custom_call.1} parent=1 // pred_check
      _
    $region19: #{tpu_custom_call.1} parent=1 // pred_check_branch
      %35 = sbr.rel (0) target = $region21
    $region20: #{tpu_custom_call.1} parent=1 // pred_region
      _
    $region21: #{tpu_custom_call.1} parent=1 // pred_fallthru
      _
    // Predicated region
    $region22: #{tpu_custom_call.1} parent=1 // pred_check
      _
    $region23: #{tpu_custom_call.1} parent=1 // pred_check_branch
      %37 = sbr.rel (0) target = $region25
    $region24: #{tpu_custom_call.1} parent=1 // pred_region
      _
    $region25: #{tpu_custom_call.1} parent=1 // pred_fallthru
      _
    // Predicated region
    $region26: #{tpu_custom_call.1} parent=1 // pred_check
      _
    $region27: #{tpu_custom_call.1} parent=1 // pred_check_branch
      %39 = sbr.rel (0) target = $region29
    $region28: #{tpu_custom_call.1} parent=1 // pred_region
      _
    $region29: #{tpu_custom_call.1} parent=1 // pred_fallthru
      _
    // Predicated region
    $region30: #{tpu_custom_call.1} parent=1 // pred_check
      _
    $region31: #{tpu_custom_call.1} parent=1 // pred_check_branch
      %41 = sbr.rel (0) target = $region33
    $region32: #{tpu_custom_call.1} parent=1 // pred_region
      _
    $region33: #{tpu_custom_call.1} parent=1 // pred_fallthru
      _
    // Predicated region
    $region34: #{tpu_custom_call.1} parent=1 // pred_check
      _
    $region35: #{tpu_custom_call.1} parent=1 // pred_check_branch
      %43 = sbr.rel (0) target = $region37
    $region36: #{tpu_custom_call.1} parent=1 // pred_region
      _
    $region37: #{tpu_custom_call.1} parent=1 // pred_fallthru
      _
    // Predicated region
    $region38: #{tpu_custom_call.1} parent=1 // pred_check
      _
    $region39: #{tpu_custom_call.1} parent=1 // pred_check_branch
      %45 = sbr.rel (0) target = $region41
    $region40: #{tpu_custom_call.1} parent=1 // pred_region
      _
    $region41: #{tpu_custom_call.1} parent=1 // pred_fallthru
      _
    // Predicated region
    $region42: #{tpu_custom_call.1} parent=1 // pred_check
      _
    $region43: #{tpu_custom_call.1} parent=1 // pred_check_branch
      %47 = sbr.rel (0) target = $region45
    $region44: #{tpu_custom_call.1} parent=1 // pred_region
      _
    $region45: #{tpu_custom_call.1} parent=1 // pred_fallthru
      _
    // Predicated region
    $region46: #{tpu_custom_call.1} parent=1 // pred_check
      _
    $region47: #{tpu_custom_call.1} parent=1 // pred_check_branch
      %49 = sbr.rel (0) target = $region49
    $region48: #{tpu_custom_call.1} parent=1 // pred_region
      _
    $region49: #{tpu_custom_call.1} parent=1 // pred_fallthru
      _
    // Predicated region
    $region50: #{tpu_custom_call.1} parent=1 // pred_check
      _
    $region51: #{tpu_custom_call.1} parent=1 // pred_check_branch
      %51 = sbr.rel (0) target = $region53
    $region52: #{tpu_custom_call.1} parent=1 // pred_region
      _
    $region53: #{tpu_custom_call.1} parent=1 // pred_fallthru
      _
    // Predicated region
    $region54: #{tpu_custom_call.1} parent=1 // pred_check
      _
    $region55: #{tpu_custom_call.1} parent=1 // pred_check_branch
      %53 = sbr.rel (0) target = $region57
    $region56: #{tpu_custom_call.1} parent=1 // pred_region
      _
    $region57: #{tpu_custom_call.1} parent=1 // pred_fallthru
      _
    // Predicated region
    $region58: #{tpu_custom_call.1} parent=1 // pred_check
      _
    $region59: #{tpu_custom_call.1} parent=1 // pred_check_branch
      %55 = sbr.rel (0) target = $region61
    $region60: #{tpu_custom_call.1} parent=1 // pred_region
      _
    $region61: #{tpu_custom_call.1} parent=1 // pred_fallthru
      _
    // Predicated region
    $region62: #{tpu_custom_call.1} parent=1 // pred_check
      _
    $region63: #{tpu_custom_call.1} parent=1 // pred_check_branch
      %57 = sbr.rel (0) target = $region65
    $region64: #{tpu_custom_call.1} parent=1 // pred_region
      _
    $region65: #{tpu_custom_call.1} parent=1 // pred_fallthru
      _
    %v58 = vld [vmem:[%s0] sm:$0xff]
    %v59 = vld [vmem:[%s0 + $0x8] sm:$0xff]
    %v60 = vld [vmem:[%s0 + $0x10] sm:$0xff]
    %v61 = vld [vmem:[%s0 + $0x18] sm:$0xff]
    %v62 = vld [vmem:[%s0 + $0x20] sm:$0xff]
    %v63 = vld [vmem:[%s0 + $0x28] sm:$0xff]
    %v64 = vld [vmem:[%s0 + $0x30] sm:$0xff]
    %v65 = vld [vmem:[%s0 + $0x38] sm:$0xff]
    %v66 = vld [vmem:[%s0 + $0x40] sm:$0xff]
    %v67 = vld [vmem:[%s0 + $0x48] sm:$0xff]
    %v68 = vld [vmem:[%s0 + $0x50] sm:$0xff]
    %v69 = vld [vmem:[%s0 + $0x58] sm:$0xff]
    %v70 = vld [vmem:[%s0 + $0x60] sm:$0xff]
    %v71 = vld [vmem:[%s0 + $0x68] sm:$0xff]
    %v72 = vld [vmem:[%s0 + $0x70] sm:$0xff]
    %v73 = vld [vmem:[%s0 + $0x78] sm:$0xff]
    %v74 = vld [vmem:[%s3] sm:$0xff]
    %v75 = vld [vmem:[%s3 + $0x8] sm:$0xff]
    %v76 = vld [vmem:[%s4] sm:$0x1]
    %v78 = vlaneseq
    %v79 = vshrl.u32 %v78, 7
    %v80 = vsub.s32 0, %v79
    %v81 = vrot.slane %v76, %v80
    %vm83 = vcmask 130048
    %v85 = vsel %vm83, %v58, 0
    %v88 = vsel %vm83, %v59, 0
    %v91 = vsel %vm83, %v60, 0
    %v94 = vsel %vm83, %v61, 0
    %v97 = vsel %vm83, %v62, 0
    %v100 = vsel %vm83, %v63, 0
    %v103 = vsel %vm83, %v64, 0
    %v106 = vsel %vm83, %v65, 0
    %v109 = vsel %vm83, %v66, 0
    %v112 = vsel %vm83, %v67, 0
    %v115 = vsel %vm83, %v68, 0
    %v118 = vsel %vm83, %v69, 0
    %v121 = vsel %vm83, %v70, 0
    %v124 = vsel %vm83, %v71, 0
    %v127 = vsel %vm83, %v72, 0
    %v130 = vsel %vm83, %v73, 0
    %132 = vmatprep.subr.mxu0 0.0
    %133 = vmatpush1.msra.mxu0 %v74
    %134 = vmatprep.subr.mxu0 0.0
    %135 = vmatpush1.msra.mxu0 %v75
    %136 = vmatprep.subr.mxu0 0.0
    %137 = vmatpush1.msra.mxu0 0.0
    %138 = vmatprep.subr.mxu0 0.0
    %139 = vmatpush1.msra.mxu0 0.0
    %140 = vmatprep.subr.mxu0 0.0
    %141 = vmatpush1.msra.mxu0 0.0
    %142 = vmatprep.subr.mxu0 0.0
    %143 = vmatpush1.msra.mxu0 0.0
    %144 = vmatprep.subr.mxu0 0.0
    %145 = vmatpush1.msra.mxu0 0.0
    %146 = vmatprep.subr.mxu0 0.0
    %147 = vmatpush1.msra.mxu0 0.0
    %148 = vmatprep.subr.mxu0 0.0
    %149 = vmatpush1.msra.mxu0 0.0
    %150 = vmatprep.subr.mxu0 0.0
    %151 = vmatpush1.msra.mxu0 0.0
    %152 = vmatprep.subr.mxu0 0.0
    %153 = vmatpush1.msra.mxu0 0.0
    %154 = vmatprep.subr.mxu0 0.0
    %155 = vmatpush1.msra.mxu0 0.0
    %156 = vmatprep.subr.mxu0 0.0
    %157 = vmatpush1.msra.mxu0 0.0
    %158 = vmatprep.subr.mxu0 0.0
    %159 = vmatpush1.msra.mxu0 0.0
    %160 = vmatprep.subr.mxu0 0.0
    %161 = vmatpush1.msra.mxu0 0.0
    %162 = vmatprep.subr.mxu0 0.0
    %163 = vmatpush1.msra.mxu0 0.0
    %164 = vmatprep.subr.mxu0 0.0
    %165 = vmatpush1.msra.mxu0 0.0
    %166 = vmatprep.subr.mxu0 0.0
    %167 = vmatpush1.msra.mxu0 0.0
    %168 = vmatprep.subr.mxu0 0.0
    %169 = vmatpush1.msra.mxu0 0.0
    %170 = vmatprep.subr.mxu0 0.0
    %171 = vmatpush1.msra.mxu0 0.0
    %172 = vmatprep.subr.mxu0 0.0
    %173 = vmatpush1.msra.mxu0 0.0
    %174 = vmatprep.subr.mxu0 0.0
    %175 = vmatpush1.msra.mxu0 0.0
    %176 = vmatprep.subr.mxu0 0.0
    %177 = vmatpush1.msra.mxu0 0.0
    %178 = vmatprep.subr.mxu0 0.0
    %179 = vmatpush1.msra.mxu0 0.0
    %180 = vmatprep.subr.mxu0 0.0
    %181 = vmatpush1.msra.mxu0 0.0
    %182 = vmatprep.subr.mxu0 0.0
    %183 = vmatpush1.msra.mxu0 0.0
    %184 = vmatprep.subr.mxu0 0.0
    %185 = vmatpush1.msra.mxu0 0.0
    %186 = vmatprep.subr.mxu0 0.0
    %187 = vmatpush1.msra.mxu0 0.0
    %188 = vmatprep.subr.mxu0 0.0
    %189 = vmatpush1.msra.mxu0 0.0
    %190 = vmatprep.subr.mxu0 0.0
    %191 = vmatpush1.msra.mxu0 0.0
    %192 = vmatprep.subr.mxu0 0.0
    %193 = vmatpush1.msra.mxu0 0.0
    %194 = vmatprep.subr.mxu0 0.0
    %195 = vmatpush1.msra.mxu0 0.0
    %196 = vmatprep.mubr.f32.mxu0 0.0
    %197 = vmatmul.mubr.f32.gmra.mrb[0].mxu0 %v85
    %v198 = vpop.f32.mrb[0].mxu0
    %v199 = vadd.f32 %v81, %v198
    %v200 = vpop.f32.mrb[0].mxu0
    %201 = vmatprep.mubr.f32.mxu0 0.0
    %202 = vmatmul.mubr.f32.gmra.mrb[0].mxu0 %v88
    %v203 = vpop.f32.mrb[0].mxu0
    %v204 = vadd.f32 %v81, %v203
    %v205 = vpop.f32.mrb[0].mxu0
    %206 = vmatprep.mubr.f32.mxu0 0.0
    %207 = vmatmul.mubr.f32.gmra.mrb[0].mxu0 %v91
    %v208 = vpop.f32.mrb[0].mxu0
    %v209 = vadd.f32 %v81, %v208
    %v210 = vpop.f32.mrb[0].mxu0
    %211 = vmatprep.mubr.f32.mxu0 0.0
    %212 = vmatmul.mubr.f32.gmra.mrb[0].mxu0 %v94
    %v213 = vpop.f32.mrb[0].mxu0
    %v214 = vadd.f32 %v81, %v213
    %v215 = vpop.f32.mrb[0].mxu0
    %216 = vmatprep.mubr.f32.mxu0 0.0
    %217 = vmatmul.mubr.f32.gmra.mrb[0].mxu0 %v97
    %v218 = vpop.f32.mrb[0].mxu0
    %v219 = vadd.f32 %v81, %v218
    %v220 = vpop.f32.mrb[0].mxu0
    %221 = vmatprep.mubr.f32.mxu0 0.0
    %222 = vmatmul.mubr.f32.gmra.mrb[0].mxu0 %v100
    %v223 = vpop.f32.mrb[0].mxu0
    %v224 = vadd.f32 %v81, %v223
    %v225 = vpop.f32.mrb[0].mxu0
    %226 = vmatprep.mubr.f32.mxu0 0.0
    %227 = vmatmul.mubr.f32.gmra.mrb[0].mxu0 %v103
    %v228 = vpop.f32.mrb[0].mxu0
    %v229 = vadd.f32 %v81, %v228
    %v230 = vpop.f32.mrb[0].mxu0
    %231 = vmatprep.mubr.f32.mxu0 0.0
    %232 = vmatmul.mubr.f32.gmra.mrb[0].mxu0 %v106
    %v233 = vpop.f32.mrb[0].mxu0
    %v234 = vadd.f32 %v81, %v233
    %v235 = vpop.f32.mrb[0].mxu0
    %236 = vmatprep.mubr.f32.mxu0 0.0
    %237 = vmatmul.mubr.f32.gmra.mrb[0].mxu0 %v109
    %v238 = vpop.f32.mrb[0].mxu0
    %v239 = vadd.f32 %v81, %v238
    %v240 = vpop.f32.mrb[0].mxu0
    %241 = vmatprep.mubr.f32.mxu0 0.0
    %242 = vmatmul.mubr.f32.gmra.mrb[0].mxu0 %v112
    %v243 = vpop.f32.mrb[0].mxu0
    %v244 = vadd.f32 %v81, %v243
    %v245 = vpop.f32.mrb[0].mxu0
    %246 = vmatprep.mubr.f32.mxu0 0.0
    %247 = vmatmul.mubr.f32.gmra.mrb[0].mxu0 %v115
    %v248 = vpop.f32.mrb[0].mxu0
    %v249 = vadd.f32 %v81, %v248
    %v250 = vpop.f32.mrb[0].mxu0
    %251 = vmatprep.mubr.f32.mxu0 0.0
    %252 = vmatmul.mubr.f32.gmra.mrb[0].mxu0 %v118
    %v253 = vpop.f32.mrb[0].mxu0
    %v254 = vadd.f32 %v81, %v253
    %v255 = vpop.f32.mrb[0].mxu0
    %256 = vmatprep.mubr.f32.mxu0 0.0
    %257 = vmatmul.mubr.f32.gmra.mrb[0].mxu0 %v121
    %v258 = vpop.f32.mrb[0].mxu0
    %v259 = vadd.f32 %v81, %v258
    %v260 = vpop.f32.mrb[0].mxu0
    %261 = vmatprep.mubr.f32.mxu0 0.0
    %262 = vmatmul.mubr.f32.gmra.mrb[0].mxu0 %v124
    %v263 = vpop.f32.mrb[0].mxu0
    %v264 = vadd.f32 %v81, %v263
    %v265 = vpop.f32.mrb[0].mxu0
    %266 = vmatprep.mubr.f32.mxu0 0.0
    %267 = vmatmul.mubr.f32.gmra.mrb[0].mxu0 %v127
    %v268 = vpop.f32.mrb[0].mxu0
    %v269 = vadd.f32 %v81, %v268
    %v270 = vpop.f32.mrb[0].mxu0
    %271 = vmatprep.mubr.f32.mxu0 0.0
    %272 = vmatmul.mubr.f32.gmra.mrb[0].mxu0 %v130
    %v273 = vpop.f32.mrb[0].mxu0
    %v274 = vadd.f32 %v81, %v273
    %v275 = vpop.f32.mrb[0].mxu0
    %276 = vdwg.mxu0
    %v277 = vld [vmem:[%s5] sm:$0xff]
    %v278 = vld [vmem:[%s5 + $0x8] sm:$0xff]
    %v279 = vld [vmem:[%s5 + $0x10] sm:$0xff]
    %v280 = vld [vmem:[%s5 + $0x18] sm:$0xff]
    %v281 = vld [vmem:[%s6] sm:$0x1]
    %vm282 = vcmask 261120
    %v284 = vsel %vm282, 0.0, 0
    %286 = vmatprep.subr.mxu0 0.0
    %287 = vmatpush1.msra.mxu0 %v277
    %288 = vmatprep.subr.mxu0 0.0
    %289 = vmatpush1.msra.mxu0 %v278
    %290 = vmatprep.subr.mxu0 0.0
    %291 = vmatpush1.msra.mxu0 %v279
    %292 = vmatprep.subr.mxu0 0.0
    %293 = vmatpush1.msra.mxu0 %v280
    %294 = vmatprep.subr.mxu0 0.0
    %295 = vmatpush1.msra.mxu0 0.0
    %296 = vmatprep.subr.mxu0 0.0
    %297 = vmatpush1.msra.mxu0 0.0
    %298 = vmatprep.subr.mxu0 0.0
    %299 = vmatpush1.msra.mxu0 0.0
    %300 = vmatprep.subr.mxu0 0.0
    %301 = vmatpush1.msra.mxu0 0.0
    %302 = vmatprep.subr.mxu0 0.0
    %303 = vmatpush1.msra.mxu0 0.0
    %304 = vmatprep.subr.mxu0 0.0
    %305 = vmatpush1.msra.mxu0 0.0
    %306 = vmatprep.subr.mxu0 0.0
    %307 = vmatpush1.msra.mxu0 0.0
    %308 = vmatprep.subr.mxu0 0.0
    %309 = vmatpush1.msra.mxu0 0.0
    %310 = vmatprep.subr.mxu0 0.0
    %311 = vmatpush1.msra.mxu0 0.0
    %312 = vmatprep.subr.mxu0 0.0
    %313 = vmatpush1.msra.mxu0 0.0
    %314 = vmatprep.subr.mxu0 0.0
    %315 = vmatpush1.msra.mxu0 0.0
    %316 = vmatprep.subr.mxu0 0.0
    %317 = vmatpush1.msra.mxu0 0.0
    %318 = vmatprep.subr.mxu0 0.0
    %319 = vmatpush1.msra.mxu0 0.0
    %320 = vmatprep.subr.mxu0 0.0
    %321 = vmatpush1.msra.mxu0 0.0
    %322 = vmatprep.subr.mxu0 0.0
    %323 = vmatpush1.msra.mxu0 0.0
    %324 = vmatprep.subr.mxu0 0.0
    %325 = vmatpush1.msra.mxu0 0.0
    %326 = vmatprep.subr.mxu0 0.0
    %327 = vmatpush1.msra.mxu0 0.0
    %328 = vmatprep.subr.mxu0 0.0
    %329 = vmatpush1.msra.mxu0 0.0
    %330 = vmatprep.subr.mxu0 0.0
    %331 = vmatpush1.msra.mxu0 0.0
    %332 = vmatprep.subr.mxu0 0.0
    %333 = vmatpush1.msra.mxu0 0.0
    %334 = vmatprep.subr.mxu0 0.0
    %335 = vmatpush1.msra.mxu0 0.0
    %336 = vmatprep.subr.mxu0 0.0
    %337 = vmatpush1.msra.mxu0 0.0
    %338 = vmatprep.subr.mxu0 0.0
    %339 = vmatpush1.msra.mxu0 0.0
    %340 = vmatprep.subr.mxu0 0.0
    %341 = vmatpush1.msra.mxu0 0.0
    %342 = vmatprep.subr.mxu0 0.0
    %343 = vmatpush1.msra.mxu0 0.0
    %344 = vmatprep.subr.mxu0 0.0
    %345 = vmatpush1.msra.mxu0 0.0
    %346 = vmatprep.subr.mxu0 0.0
    %347 = vmatpush1.msra.mxu0 0.0
    %348 = vmatprep.subr.mxu0 0.0
    %349 = vmatpush1.msra.mxu0 0.0
    %350 = vmatprep.mubr.f32.mxu0 0.0
    %351 = vmatmul.mubr.f32.gmra.mrb[0].mxu0 %v284
    %v352 = vpop.f32.mrb[0].mxu0
    %v353 = vadd.f32 0.0, %v352
    %v354 = vpop.f32.mrb[0].mxu0
    %355 = vmatprep.mubr.f32.mxu0 0.0
    %356 = vmatmul.mubr.f32.gmra.mrb[0].mxu0 %v284
    %v357 = vpop.f32.mrb[0].mxu0
    %v358 = vadd.f32 0.0, %v357
    %v359 = vpop.f32.mrb[0].mxu0
    %360 = vdwg.mxu0
    %v361 = vadd.f32 %v199, %v353
    %v362 = vadd.f32 %v204, %v358
    %v364 = vlaneseq
    %v365 = vshrl.u32 %v364, 7
    %v366 = vsub.s32 0, %v365
    %v367 = vrot.slane %v281, %v366
    %v369 = vadd.f32 %v361, %v367
    %v370 = vadd.f32 %v362, %v367
    %v371 = vtanh.pop %v369
    %v372 = vtanh.pop %v370
    %v373 = vld [vmem:[%s1] sm:$0xff]
    %v374 = vld [vmem:[%s1 + $0x8] sm:$0xff]
    %376 = vset.pattern.permute.xlu0 0
    %377 = vperm.xlu0 %376, %v373
    %v378 = vpop.permute.xlu0 %377
    %381 = vset.pattern.permute.xlu0 0
    %382 = vperm.xlu0 %381, %v374
    %v383 = vpop.permute.xlu0 %382
    %v385 = vmul.f32 %v371, %v378
    %v386 = vmul.f32 %v372, %v383
    %v388 = vsel %vm282, %v371, 0
    %v391 = vsel %vm282, %v372, 0
    %393 = vmatprep.subr.mxu0 0.0
    %394 = vmatpush1.msra.mxu0 %v277
    %395 = vmatprep.subr.mxu0 0.0
    %396 = vmatpush1.msra.mxu0 %v278
    %397 = vmatprep.subr.mxu0 0.0
    %398 = vmatpush1.msra.mxu0 %v279
    %399 = vmatprep.subr.mxu0 0.0
    %400 = vmatpush1.msra.mxu0 %v280
    %401 = vmatprep.subr.mxu0 0.0
    %402 = vmatpush1.msra.mxu0 0.0
    %403 = vmatprep.subr.mxu0 0.0
    %404 = vmatpush1.msra.mxu0 0.0
    %405 = vmatprep.subr.mxu0 0.0
    %406 = vmatpush1.msra.mxu0 0.0
    %407 = vmatprep.subr.mxu0 0.0
    %408 = vmatpush1.msra.mxu0 0.0
    %409 = vmatprep.subr.mxu0 0.0
    %410 = vmatpush1.msra.mxu0 0.0
    %411 = vmatprep.subr.mxu0 0.0
    %412 = vmatpush1.msra.mxu0 0.0
    %413 = vmatprep.subr.mxu0 0.0
    %414 = vmatpush1.msra.mxu0 0.0
    %415 = vmatprep.subr.mxu0 0.0
    %416 = vmatpush1.msra.mxu0 0.0
    %417 = vmatprep.subr.mxu0 0.0
    %418 = vmatpush1.msra.mxu0 0.0
    %419 = vmatprep.subr.mxu0 0.0
    %420 = vmatpush1.msra.mxu0 0.0
    %421 = vmatprep.subr.mxu0 0.0
    %422 = vmatpush1.msra.mxu0 0.0
    %423 = vmatprep.subr.mxu0 0.0
    %424 = vmatpush1.msra.mxu0 0.0
    %425 = vmatprep.subr.mxu0 0.0
    %426 = vmatpush1.msra.mxu0 0.0
    %427 = vmatprep.subr.mxu0 0.0
    %428 = vmatpush1.msra.mxu0 0.0
    %429 = vmatprep.subr.mxu0 0.0
    %430 = vmatpush1.msra.mxu0 0.0
    %431 = vmatprep.subr.mxu0 0.0
    %432 = vmatpush1.msra.mxu0 0.0
    %433 = vmatprep.subr.mxu0 0.0
    %434 = vmatpush1.msra.mxu0 0.0
    %435 = vmatprep.subr.mxu0 0.0
    %436 = vmatpush1.msra.mxu0 0.0
    %437 = vmatprep.subr.mxu0 0.0
    %438 = vmatpush1.msra.mxu0 0.0
    %439 = vmatprep.subr.mxu0 0.0
    %440 = vmatpush1.msra.mxu0 0.0
    %441 = vmatprep.subr.mxu0 0.0
    %442 = vmatpush1.msra.mxu0 0.0
    %443 = vmatprep.subr.mxu0 0.0
    %444 = vmatpush1.msra.mxu0 0.0
    %445 = vmatprep.subr.mxu0 0.0
    %446 = vmatpush1.msra.mxu0 0.0
    %447 = vmatprep.subr.mxu0 0.0
    %448 = vmatpush1.msra.mxu0 0.0
    %449 = vmatprep.subr.mxu0 0.0
    %450 = vmatpush1.msra.mxu0 0.0
    %451 = vmatprep.subr.mxu0 0.0
    %452 = vmatpush1.msra.mxu0 0.0
    %453 = vmatprep.subr.mxu0 0.0
    %454 = vmatpush1.msra.mxu0 0.0
    %455 = vmatprep.subr.mxu0 0.0
    %456 = vmatpush1.msra.mxu0 0.0
    %457 = vmatprep.mubr.f32.mxu0 0.0
    %458 = vmatmul.mubr.f32.gmra.mrb[0].mxu0 %v388
    %v459 = vpop.f32.mrb[0].mxu0
    %v460 = vadd.f32 0.0, %v459
    %v461 = vpop.f32.mrb[0].mxu0
    %462 = vmatprep.mubr.f32.mxu0 0.0
    %463 = vmatmul.mubr.f32.gmra.mrb[0].mxu0 %v391
    %v464 = vpop.f32.mrb[0].mxu0
    %v465 = vadd.f32 0.0, %v464
    %v466 = vpop.f32.mrb[0].mxu0
    %467 = vdwg.mxu0
    %v468 = vadd.f32 %v209, %v460
    %v469 = vadd.f32 %v214, %v465
    %v470 = vadd.f32 %v468, %v367
    %v471 = vadd.f32 %v469, %v367
    %v472 = vtanh.pop %v470
    %v473 = vtanh.pop %v471
    %s474 = scalar_lea.vmem %s1, 16
    %v475 = vld [vmem:[%s474] sm:$0xff]
    %v476 = vld [vmem:[%s474 + $0x8] sm:$0xff]
    %478 = vset.pattern.permute.xlu0 0
    %479 = vperm.xlu0 %478, %v475
    %v480 = vpop.permute.xlu0 %479
    %483 = vset.pattern.permute.xlu0 0
    %484 = vperm.xlu0 %483, %v476
    %v485 = vpop.permute.xlu0 %484
    %v487 = vmul.f32 %v472, %v480
    %v488 = vmul.f32 %v473, %v485
    %v490 = vsel %vm282, %v472, 0
    %v493 = vsel %vm282, %v473, 0
    %495 = vmatprep.subr.mxu0 0.0
    %496 = vmatpush1.msra.mxu0 %v277
    %497 = vmatprep.subr.mxu0 0.0
    %498 = vmatpush1.msra.mxu0 %v278
    %499 = vmatprep.subr.mxu0 0.0
    %500 = vmatpush1.msra.mxu0 %v279
    %501 = vmatprep.subr.mxu0 0.0
    %502 = vmatpush1.msra.mxu0 %v280
    %503 = vmatprep.subr.mxu0 0.0
    %504 = vmatpush1.msra.mxu0 0.0
    %505 = vmatprep.subr.mxu0 0.0
    %506 = vmatpush1.msra.mxu0 0.0
    %507 = vmatprep.subr.mxu0 0.0
    %508 = vmatpush1.msra.mxu0 0.0
    %509 = vmatprep.subr.mxu0 0.0
    %510 = vmatpush1.msra.mxu0 0.0
    %511 = vmatprep.subr.mxu0 0.0
    %512 = vmatpush1.msra.mxu0 0.0
    %513 = vmatprep.subr.mxu0 0.0
    %514 = vmatpush1.msra.mxu0 0.0
    %515 = vmatprep.subr.mxu0 0.0
    %516 = vmatpush1.msra.mxu0 0.0
    %517 = vmatprep.subr.mxu0 0.0
    %518 = vmatpush1.msra.mxu0 0.0
    %519 = vmatprep.subr.mxu0 0.0
    %520 = vmatpush1.msra.mxu0 0.0
    %521 = vmatprep.subr.mxu0 0.0
    %522 = vmatpush1.msra.mxu0 0.0
    %523 = vmatprep.subr.mxu0 0.0
    %524 = vmatpush1.msra.mxu0 0.0
    %525 = vmatprep.subr.mxu0 0.0
    %526 = vmatpush1.msra.mxu0 0.0
    %527 = vmatprep.subr.mxu0 0.0
    %528 = vmatpush1.msra.mxu0 0.0
    %529 = vmatprep.subr.mxu0 0.0
    %530 = vmatpush1.msra.mxu0 0.0
    %531 = vmatprep.subr.mxu0 0.0
    %532 = vmatpush1.msra.mxu0 0.0
    %533 = vmatprep.subr.mxu0 0.0
    %534 = vmatpush1.msra.mxu0 0.0
    %535 = vmatprep.subr.mxu0 0.0
    %536 = vmatpush1.msra.mxu0 0.0
    %537 = vmatprep.subr.mxu0 0.0
    %538 = vmatpush1.msra.mxu0 0.0
    %539 = vmatprep.subr.mxu0 0.0
    %540 = vmatpush1.msra.mxu0 0.0
    %541 = vmatprep.subr.mxu0 0.0
    %542 = vmatpush1.msra.mxu0 0.0
    %543 = vmatprep.subr.mxu0 0.0
    %544 = vmatpush1.msra.mxu0 0.0
    %545 = vmatprep.subr.mxu0 0.0
    %546 = vmatpush1.msra.mxu0 0.0
    %547 = vmatprep.subr.mxu0 0.0
    %548 = vmatpush1.msra.mxu0 0.0
    %549 = vmatprep.subr.mxu0 0.0
    %550 = vmatpush1.msra.mxu0 0.0
    %551 = vmatprep.subr.mxu0 0.0
    %552 = vmatpush1.msra.mxu0 0.0
    %553 = vmatprep.subr.mxu0 0.0
    %554 = vmatpush1.msra.mxu0 0.0
    %555 = vmatprep.subr.mxu0 0.0
    %556 = vmatpush1.msra.mxu0 0.0
    %557 = vmatprep.subr.mxu0 0.0
    %558 = vmatpush1.msra.mxu0 0.0
    %559 = vmatprep.mubr.f32.mxu0 0.0
    %560 = vmatmul.mubr.f32.gmra.mrb[0].mxu0 %v490
    %v561 = vpop.f32.mrb[0].mxu0
    %v562 = vadd.f32 0.0, %v561
    %v563 = vpop.f32.mrb[0].mxu0
    %564 = vmatprep.mubr.f32.mxu0 0.0
    %565 = vmatmul.mubr.f32.gmra.mrb[0].mxu0 %v493
    %v566 = vpop.f32.mrb[0].mxu0
    %v567 = vadd.f32 0.0, %v566
    %v568 = vpop.f32.mrb[0].mxu0
    %569 = vdwg.mxu0
    %v570 = vadd.f32 %v219, %v562
    %v571 = vadd.f32 %v224, %v567
    %v572 = vadd.f32 %v570, %v367
    %v573 = vadd.f32 %v571, %v367
    %v574 = vtanh.pop %v572
    %v575 = vtanh.pop %v573
    %s576 = scalar_lea.vmem %s1, 32
    %v577 = vld [vmem:[%s576] sm:$0xff]
    %v578 = vld [vmem:[%s576 + $0x8] sm:$0xff]
    %580 = vset.pattern.permute.xlu0 0
    %581 = vperm.xlu0 %580, %v577
    %v582 = vpop.permute.xlu0 %581
    %585 = vset.pattern.permute.xlu0 0
    %586 = vperm.xlu0 %585, %v578
    %v587 = vpop.permute.xlu0 %586
    %v589 = vmul.f32 %v574, %v582
    %v590 = vmul.f32 %v575, %v587
    %v592 = vsel %vm282, %v574, 0
    %v595 = vsel %vm282, %v575, 0
    %597 = vmatprep.subr.mxu0 0.0
    %598 = vmatpush1.msra.mxu0 %v277
    %599 = vmatprep.subr.mxu0 0.0
    %600 = vmatpush1.msra.mxu0 %v278
    %601 = vmatprep.subr.mxu0 0.0
    %602 = vmatpush1.msra.mxu0 %v279
    %603 = vmatprep.subr.mxu0 0.0
    %604 = vmatpush1.msra.mxu0 %v280
    %605 = vmatprep.subr.mxu0 0.0
    %606 = vmatpush1.msra.mxu0 0.0
    %607 = vmatprep.subr.mxu0 0.0
    %608 = vmatpush1.msra.mxu0 0.0
    %609 = vmatprep.subr.mxu0 0.0
    %610 = vmatpush1.msra.mxu0 0.0
    %611 = vmatprep.subr.mxu0 0.0
    %612 = vmatpush1.msra.mxu0 0.0
    %613 = vmatprep.subr.mxu0 0.0
    %614 = vmatpush1.msra.mxu0 0.0
    %615 = vmatprep.subr.mxu0 0.0
    %616 = vmatpush1.msra.mxu0 0.0
    %617 = vmatprep.subr.mxu0 0.0
    %618 = vmatpush1.msra.mxu0 0.0
    %619 = vmatprep.subr.mxu0 0.0
    %620 = vmatpush1.msra.mxu0 0.0
    %621 = vmatprep.subr.mxu0 0.0
    %622 = vmatpush1.msra.mxu0 0.0
    %623 = vmatprep.subr.mxu0 0.0
    %624 = vmatpush1.msra.mxu0 0.0
    %625 = vmatprep.subr.mxu0 0.0
    %626 = vmatpush1.msra.mxu0 0.0
    %627 = vmatprep.subr.mxu0 0.0
    %628 = vmatpush1.msra.mxu0 0.0
    %629 = vmatprep.subr.mxu0 0.0
    %630 = vmatpush1.msra.mxu0 0.0
    %631 = vmatprep.subr.mxu0 0.0
    %632 = vmatpush1.msra.mxu0 0.0
    %633 = vmatprep.subr.mxu0 0.0
    %634 = vmatpush1.msra.mxu0 0.0
    %635 = vmatprep.subr.mxu0 0.0
    %636 = vmatpush1.msra.mxu0 0.0
    %637 = vmatprep.subr.mxu0 0.0
    %638 = vmatpush1.msra.mxu0 0.0
    %639 = vmatprep.subr.mxu0 0.0
    %640 = vmatpush1.msra.mxu0 0.0
    %641 = vmatprep.subr.mxu0 0.0
    %642 = vmatpush1.msra.mxu0 0.0
    %643 = vmatprep.subr.mxu0 0.0
    %644 = vmatpush1.msra.mxu0 0.0
    %645 = vmatprep.subr.mxu0 0.0
    %646 = vmatpush1.msra.mxu0 0.0
    %647 = vmatprep.subr.mxu0 0.0
    %648 = vmatpush1.msra.mxu0 0.0
    %649 = vmatprep.subr.mxu0 0.0
    %650 = vmatpush1.msra.mxu0 0.0
    %651 = vmatprep.subr.mxu0 0.0
    %652 = vmatpush1.msra.mxu0 0.0
    %653 = vmatprep.subr.mxu0 0.0
    %654 = vmatpush1.msra.mxu0 0.0
    %655 = vmatprep.subr.mxu0 0.0
    %656 = vmatpush1.msra.mxu0 0.0
    %657 = vmatprep.subr.mxu0 0.0
    %658 = vmatpush1.msra.mxu0 0.0
    %659 = vmatprep.subr.mxu0 0.0
    %660 = vmatpush1.msra.mxu0 0.0
    %661 = vmatprep.mubr.f32.mxu0 0.0
    %662 = vmatmul.mubr.f32.gmra.mrb[0].mxu0 %v592
    %v663 = vpop.f32.mrb[0].mxu0
    %v664 = vadd.f32 0.0, %v663
    %v665 = vpop.f32.mrb[0].mxu0
    %666 = vmatprep.mubr.f32.mxu0 0.0
    %667 = vmatmul.mubr.f32.gmra.mrb[0].mxu0 %v595
    %v668 = vpop.f32.mrb[0].mxu0
    %v669 = vadd.f32 0.0, %v668
    %v670 = vpop.f32.mrb[0].mxu0
    %671 = vdwg.mxu0
    %v672 = vadd.f32 %v229, %v664
    %v673 = vadd.f32 %v234, %v669
    %v674 = vadd.f32 %v672, %v367
    %v675 = vadd.f32 %v673, %v367
    %v676 = vtanh.pop %v674
    %v677 = vtanh.pop %v675
    %s678 = scalar_lea.vmem %s1, 48
    %v679 = vld [vmem:[%s678] sm:$0xff]
    %v680 = vld [vmem:[%s678 + $0x8] sm:$0xff]
    %682 = vset.pattern.permute.xlu0 0
    %683 = vperm.xlu0 %682, %v679
    %v684 = vpop.permute.xlu0 %683
    %687 = vset.pattern.permute.xlu0 0
    %688 = vperm.xlu0 %687, %v680
    %v689 = vpop.permute.xlu0 %688
    %v691 = vmul.f32 %v676, %v684
    %v692 = vmul.f32 %v677, %v689
    %v694 = vsel %vm282, %v676, 0
    %v697 = vsel %vm282, %v677, 0
    %699 = vmatprep.subr.mxu0 0.0
    %700 = vmatpush1.msra.mxu0 %v277
    %701 = vmatprep.subr.mxu0 0.0
    %702 = vmatpush1.msra.mxu0 %v278
    %703 = vmatprep.subr.mxu0 0.0
    %704 = vmatpush1.msra.mxu0 %v279
    %705 = vmatprep.subr.mxu0 0.0
    %706 = vmatpush1.msra.mxu0 %v280
    %707 = vmatprep.subr.mxu0 0.0
    %708 = vmatpush1.msra.mxu0 0.0
    %709 = vmatprep.subr.mxu0 0.0
    %710 = vmatpush1.msra.mxu0 0.0
    %711 = vmatprep.subr.mxu0 0.0
    %712 = vmatpush1.msra.mxu0 0.0
    %713 = vmatprep.subr.mxu0 0.0
    %714 = vmatpush1.msra.mxu0 0.0
    %715 = vmatprep.subr.mxu0 0.0
    %716 = vmatpush1.msra.mxu0 0.0
    %717 = vmatprep.subr.mxu0 0.0
    %718 = vmatpush1.msra.mxu0 0.0
    %719 = vmatprep.subr.mxu0 0.0
    %720 = vmatpush1.msra.mxu0 0.0
    %721 = vmatprep.subr.mxu0 0.0
    %722 = vmatpush1.msra.mxu0 0.0
    %723 = vmatprep.subr.mxu0 0.0
    %724 = vmatpush1.msra.mxu0 0.0
    %725 = vmatprep.subr.mxu0 0.0
    %726 = vmatpush1.msra.mxu0 0.0
    %727 = vmatprep.subr.mxu0 0.0
    %728 = vmatpush1.msra.mxu0 0.0
    %729 = vmatprep.subr.mxu0 0.0
    %730 = vmatpush1.msra.mxu0 0.0
    %731 = vmatprep.subr.mxu0 0.0
    %732 = vmatpush1.msra.mxu0 0.0
    %733 = vmatprep.subr.mxu0 0.0
    %734 = vmatpush1.msra.mxu0 0.0
    %735 = vmatprep.subr.mxu0 0.0
    %736 = vmatpush1.msra.mxu0 0.0
    %737 = vmatprep.subr.mxu0 0.0
    %738 = vmatpush1.msra.mxu0 0.0
    %739 = vmatprep.subr.mxu0 0.0
    %740 = vmatpush1.msra.mxu0 0.0
    %741 = vmatprep.subr.mxu0 0.0
    %742 = vmatpush1.msra.mxu0 0.0
    %743 = vmatprep.subr.mxu0 0.0
    %744 = vmatpush1.msra.mxu0 0.0
    %745 = vmatprep.subr.mxu0 0.0
    %746 = vmatpush1.msra.mxu0 0.0
    %747 = vmatprep.subr.mxu0 0.0
    %748 = vmatpush1.msra.mxu0 0.0
    %749 = vmatprep.subr.mxu0 0.0
    %750 = vmatpush1.msra.mxu0 0.0
    %751 = vmatprep.subr.mxu0 0.0
    %752 = vmatpush1.msra.mxu0 0.0
    %753 = vmatprep.subr.mxu0 0.0
    %754 = vmatpush1.msra.mxu0 0.0
    %755 = vmatprep.subr.mxu0 0.0
    %756 = vmatpush1.msra.mxu0 0.0
    %757 = vmatprep.subr.mxu0 0.0
    %758 = vmatpush1.msra.mxu0 0.0
    %759 = vmatprep.subr.mxu0 0.0
    %760 = vmatpush1.msra.mxu0 0.0
    %761 = vmatprep.subr.mxu0 0.0
    %762 = vmatpush1.msra.mxu0 0.0
    %763 = vmatprep.mubr.f32.mxu0 0.0
    %764 = vmatmul.mubr.f32.gmra.mrb[0].mxu0 %v694
    %v765 = vpop.f32.mrb[0].mxu0
    %v766 = vadd.f32 0.0, %v765
    %v767 = vpop.f32.mrb[0].mxu0
    %768 = vmatprep.mubr.f32.mxu0 0.0
    %769 = vmatmul.mubr.f32.gmra.mrb[0].mxu0 %v697
    %v770 = vpop.f32.mrb[0].mxu0
    %v771 = vadd.f32 0.0, %v770
    %v772 = vpop.f32.mrb[0].mxu0
    %773 = vdwg.mxu0
    %v774 = vadd.f32 %v239, %v766
    %v775 = vadd.f32 %v244, %v771
    %v776 = vadd.f32 %v774, %v367
    %v777 = vadd.f32 %v775, %v367
    %v778 = vtanh.pop %v776
    %v779 = vtanh.pop %v777
    %s780 = scalar_lea.vmem %s1, 64
    %v781 = vld [vmem:[%s780] sm:$0xff]
    %v782 = vld [vmem:[%s780 + $0x8] sm:$0xff]
    %784 = vset.pattern.permute.xlu0 0
    %785 = vperm.xlu0 %784, %v781
    %v786 = vpop.permute.xlu0 %785
    %789 = vset.pattern.permute.xlu0 0
    %790 = vperm.xlu0 %789, %v782
    %v791 = vpop.permute.xlu0 %790
    %v793 = vmul.f32 %v778, %v786
    %v794 = vmul.f32 %v779, %v791
    %v796 = vsel %vm282, %v778, 0
    %v799 = vsel %vm282, %v779, 0
    %801 = vmatprep.subr.mxu0 0.0
    %802 = vmatpush1.msra.mxu0 %v277
    %803 = vmatprep.subr.mxu0 0.0
    %804 = vmatpush1.msra.mxu0 %v278
    %805 = vmatprep.subr.mxu0 0.0
    %806 = vmatpush1.msra.mxu0 %v279
    %807 = vmatprep.subr.mxu0 0.0
    %808 = vmatpush1.msra.mxu0 %v280
    %809 = vmatprep.subr.mxu0 0.0
    %810 = vmatpush1.msra.mxu0 0.0
    %811 = vmatprep.subr.mxu0 0.0
    %812 = vmatpush1.msra.mxu0 0.0
    %813 = vmatprep.subr.mxu0 0.0
    %814 = vmatpush1.msra.mxu0 0.0
    %815 = vmatprep.subr.mxu0 0.0
    %816 = vmatpush1.msra.mxu0 0.0
    %817 = vmatprep.subr.mxu0 0.0
    %818 = vmatpush1.msra.mxu0 0.0
    %819 = vmatprep.subr.mxu0 0.0
    %820 = vmatpush1.msra.mxu0 0.0
    %821 = vmatprep.subr.mxu0 0.0
    %822 = vmatpush1.msra.mxu0 0.0
    %823 = vmatprep.subr.mxu0 0.0
    %824 = vmatpush1.msra.mxu0 0.0
    %825 = vmatprep.subr.mxu0 0.0
    %826 = vmatpush1.msra.mxu0 0.0
    %827 = vmatprep.subr.mxu0 0.0
    %828 = vmatpush1.msra.mxu0 0.0
    %829 = vmatprep.subr.mxu0 0.0
    %830 = vmatpush1.msra.mxu0 0.0
    %831 = vmatprep.subr.mxu0 0.0
    %832 = vmatpush1.msra.mxu0 0.0
    %833 = vmatprep.subr.mxu0 0.0
    %834 = vmatpush1.msra.mxu0 0.0
    %835 = vmatprep.subr.mxu0 0.0
    %836 = vmatpush1.msra.mxu0 0.0
    %837 = vmatprep.subr.mxu0 0.0
    %838 = vmatpush1.msra.mxu0 0.0
    %839 = vmatprep.subr.mxu0 0.0
    %840 = vmatpush1.msra.mxu0 0.0
    %841 = vmatprep.subr.mxu0 0.0
    %842 = vmatpush1.msra.mxu0 0.0
    %843 = vmatprep.subr.mxu0 0.0
    %844 = vmatpush1.msra.mxu0 0.0
    %845 = vmatprep.subr.mxu0 0.0
    %846 = vmatpush1.msra.mxu0 0.0
    %847 = vmatprep.subr.mxu0 0.0
    %848 = vmatpush1.msra.mxu0 0.0
    %849 = vmatprep.subr.mxu0 0.0
    %850 = vmatpush1.msra.mxu0 0.0
    %851 = vmatprep.subr.mxu0 0.0
    %852 = vmatpush1.msra.mxu0 0.0
    %853 = vmatprep.subr.mxu0 0.0
    %854 = vmatpush1.msra.mxu0 0.0
    %855 = vmatprep.subr.mxu0 0.0
    %856 = vmatpush1.msra.mxu0 0.0
    %857 = vmatprep.subr.mxu0 0.0
    %858 = vmatpush1.msra.mxu0 0.0
    %859 = vmatprep.subr.mxu0 0.0
    %860 = vmatpush1.msra.mxu0 0.0
    %861 = vmatprep.subr.mxu0 0.0
    %862 = vmatpush1.msra.mxu0 0.0
    %863 = vmatprep.subr.mxu0 0.0
    %864 = vmatpush1.msra.mxu0 0.0
    %865 = vmatprep.mubr.f32.mxu0 0.0
    %866 = vmatmul.mubr.f32.gmra.mrb[0].mxu0 %v796
    %v867 = vpop.f32.mrb[0].mxu0
    %v868 = vadd.f32 0.0, %v867
    %v869 = vpop.f32.mrb[0].mxu0
    %870 = vmatprep.mubr.f32.mxu0 0.0
    %871 = vmatmul.mubr.f32.gmra.mrb[0].mxu0 %v799
    %v872 = vpop.f32.mrb[0].mxu0
    %v873 = vadd.f32 0.0, %v872
    %v874 = vpop.f32.mrb[0].mxu0
    %875 = vdwg.mxu0
    %v876 = vadd.f32 %v249, %v868
    %v877 = vadd.f32 %v254, %v873
    %v878 = vadd.f32 %v876, %v367
    %v879 = vadd.f32 %v877, %v367
    %v880 = vtanh.pop %v878
    %v881 = vtanh.pop %v879
    %s882 = scalar_lea.vmem %s1, 80
    %v883 = vld [vmem:[%s882] sm:$0xff]
    %v884 = vld [vmem:[%s882 + $0x8] sm:$0xff]
    %886 = vset.pattern.permute.xlu0 0
    %887 = vperm.xlu0 %886, %v883
    %v888 = vpop.permute.xlu0 %887
    %891 = vset.pattern.permute.xlu0 0
    %892 = vperm.xlu0 %891, %v884
    %v893 = vpop.permute.xlu0 %892
    %v895 = vmul.f32 %v880, %v888
    %v896 = vmul.f32 %v881, %v893
    %v898 = vsel %vm282, %v880, 0
    %v901 = vsel %vm282, %v881, 0
    %903 = vmatprep.subr.mxu0 0.0
    %904 = vmatpush1.msra.mxu0 %v277
    %905 = vmatprep.subr.mxu0 0.0
    %906 = vmatpush1.msra.mxu0 %v278
    %907 = vmatprep.subr.mxu0 0.0
    %908 = vmatpush1.msra.mxu0 %v279
    %909 = vmatprep.subr.mxu0 0.0
    %910 = vmatpush1.msra.mxu0 %v280
    %911 = vmatprep.subr.mxu0 0.0
    %912 = vmatpush1.msra.mxu0 0.0
    %913 = vmatprep.subr.mxu0 0.0
    %914 = vmatpush1.msra.mxu0 0.0
    %915 = vmatprep.subr.mxu0 0.0
    %916 = vmatpush1.msra.mxu0 0.0
    %917 = vmatprep.subr.mxu0 0.0
    %918 = vmatpush1.msra.mxu0 0.0
    %919 = vmatprep.subr.mxu0 0.0
    %920 = vmatpush1.msra.mxu0 0.0
    %921 = vmatprep.subr.mxu0 0.0
    %922 = vmatpush1.msra.mxu0 0.0
    %923 = vmatprep.subr.mxu0 0.0
    %924 = vmatpush1.msra.mxu0 0.0
    %925 = vmatprep.subr.mxu0 0.0
    %926 = vmatpush1.msra.mxu0 0.0
    %927 = vmatprep.subr.mxu0 0.0
    %928 = vmatpush1.msra.mxu0 0.0
    %929 = vmatprep.subr.mxu0 0.0
    %930 = vmatpush1.msra.mxu0 0.0
    %931 = vmatprep.subr.mxu0 0.0
    %932 = vmatpush1.msra.mxu0 0.0
    %933 = vmatprep.subr.mxu0 0.0
    %934 = vmatpush1.msra.mxu0 0.0
    %935 = vmatprep.subr.mxu0 0.0
    %936 = vmatpush1.msra.mxu0 0.0
    %937 = vmatprep.subr.mxu0 0.0
    %938 = vmatpush1.msra.mxu0 0.0
    %939 = vmatprep.subr.mxu0 0.0
    %940 = vmatpush1.msra.mxu0 0.0
    %941 = vmatprep.subr.mxu0 0.0
    %942 = vmatpush1.msra.mxu0 0.0
    %943 = vmatprep.subr.mxu0 0.0
    %944 = vmatpush1.msra.mxu0 0.0
    %945 = vmatprep.subr.mxu0 0.0
    %946 = vmatpush1.msra.mxu0 0.0
    %947 = vmatprep.subr.mxu0 0.0
    %948 = vmatpush1.msra.mxu0 0.0
    %949 = vmatprep.subr.mxu0 0.0
    %950 = vmatpush1.msra.mxu0 0.0
    %951 = vmatprep.subr.mxu0 0.0
    %952 = vmatpush1.msra.mxu0 0.0
    %953 = vmatprep.subr.mxu0 0.0
    %954 = vmatpush1.msra.mxu0 0.0
    %955 = vmatprep.subr.mxu0 0.0
    %956 = vmatpush1.msra.mxu0 0.0
    %957 = vmatprep.subr.mxu0 0.0
    %958 = vmatpush1.msra.mxu0 0.0
    %959 = vmatprep.subr.mxu0 0.0
    %960 = vmatpush1.msra.mxu0 0.0
    %961 = vmatprep.subr.mxu0 0.0
    %962 = vmatpush1.msra.mxu0 0.0
    %963 = vmatprep.subr.mxu0 0.0
    %964 = vmatpush1.msra.mxu0 0.0
    %965 = vmatprep.subr.mxu0 0.0
    %966 = vmatpush1.msra.mxu0 0.0
    %967 = vmatprep.mubr.f32.mxu0 0.0
    %968 = vmatmul.mubr.f32.gmra.mrb[0].mxu0 %v898
    %v969 = vpop.f32.mrb[0].mxu0
    %v970 = vadd.f32 0.0, %v969
    %v971 = vpop.f32.mrb[0].mxu0
    %972 = vmatprep.mubr.f32.mxu0 0.0
    %973 = vmatmul.mubr.f32.gmra.mrb[0].mxu0 %v901
    %v974 = vpop.f32.mrb[0].mxu0
    %v975 = vadd.f32 0.0, %v974
    %v976 = vpop.f32.mrb[0].mxu0
    %977 = vdwg.mxu0
    %v978 = vadd.f32 %v259, %v970
    %v979 = vadd.f32 %v264, %v975
    %v980 = vadd.f32 %v978, %v367
    %v981 = vadd.f32 %v979, %v367
    %v982 = vtanh.pop %v980
    %v983 = vtanh.pop %v981
    %s984 = scalar_lea.vmem %s1, 96
    %v985 = vld [vmem:[%s984] sm:$0xff]
    %v986 = vld [vmem:[%s984 + $0x8] sm:$0xff]
    %988 = vset.pattern.permute.xlu0 0
    %989 = vperm.xlu0 %988, %v985
    %v990 = vpop.permute.xlu0 %989
    %993 = vset.pattern.permute.xlu0 0
    %994 = vperm.xlu0 %993, %v986
    %v995 = vpop.permute.xlu0 %994
    %v997 = vmul.f32 %v982, %v990
    %v998 = vmul.f32 %v983, %v995
    %v1000 = vsel %vm282, %v982, 0
    %v1003 = vsel %vm282, %v983, 0
    %1005 = vmatprep.subr.mxu0 0.0
    %1006 = vmatpush1.msra.mxu0 %v277
    %1007 = vmatprep.subr.mxu0 0.0
    %1008 = vmatpush1.msra.mxu0 %v278
    %1009 = vmatprep.subr.mxu0 0.0
    %1010 = vmatpush1.msra.mxu0 %v279
    %1011 = vmatprep.subr.mxu0 0.0
    %1012 = vmatpush1.msra.mxu0 %v280
    %1013 = vmatprep.subr.mxu0 0.0
    %1014 = vmatpush1.msra.mxu0 0.0
    %1015 = vmatprep.subr.mxu0 0.0
    %1016 = vmatpush1.msra.mxu0 0.0
    %1017 = vmatprep.subr.mxu0 0.0
    %1018 = vmatpush1.msra.mxu0 0.0
    %1019 = vmatprep.subr.mxu0 0.0
    %1020 = vmatpush1.msra.mxu0 0.0
    %1021 = vmatprep.subr.mxu0 0.0
    %1022 = vmatpush1.msra.mxu0 0.0
    %1023 = vmatprep.subr.mxu0 0.0
    %1024 = vmatpush1.msra.mxu0 0.0
    %1025 = vmatprep.subr.mxu0 0.0
    %1026 = vmatpush1.msra.mxu0 0.0
    %1027 = vmatprep.subr.mxu0 0.0
    %1028 = vmatpush1.msra.mxu0 0.0
    %1029 = vmatprep.subr.mxu0 0.0
    %1030 = vmatpush1.msra.mxu0 0.0
    %1031 = vmatprep.subr.mxu0 0.0
    %1032 = vmatpush1.msra.mxu0 0.0
    %1033 = vmatprep.subr.mxu0 0.0
    %1034 = vmatpush1.msra.mxu0 0.0
    %1035 = vmatprep.subr.mxu0 0.0
    %1036 = vmatpush1.msra.mxu0 0.0
    %1037 = vmatprep.subr.mxu0 0.0
    %1038 = vmatpush1.msra.mxu0 0.0
    %1039 = vmatprep.subr.mxu0 0.0
    %1040 = vmatpush1.msra.mxu0 0.0
    %1041 = vmatprep.subr.mxu0 0.0
    %1042 = vmatpush1.msra.mxu0 0.0
    %1043 = vmatprep.subr.mxu0 0.0
    %1044 = vmatpush1.msra.mxu0 0.0
    %1045 = vmatprep.subr.mxu0 0.0
    %1046 = vmatpush1.msra.mxu0 0.0
    %1047 = vmatprep.subr.mxu0 0.0
    %1048 = vmatpush1.msra.mxu0 0.0
    %1049 = vmatprep.subr.mxu0 0.0
    %1050 = vmatpush1.msra.mxu0 0.0
    %1051 = vmatprep.subr.mxu0 0.0
    %1052 = vmatpush1.msra.mxu0 0.0
    %1053 = vmatprep.subr.mxu0 0.0
    %1054 = vmatpush1.msra.mxu0 0.0
    %1055 = vmatprep.subr.mxu0 0.0
    %1056 = vmatpush1.msra.mxu0 0.0
    %1057 = vmatprep.subr.mxu0 0.0
    %1058 = vmatpush1.msra.mxu0 0.0
    %1059 = vmatprep.subr.mxu0 0.0
    %1060 = vmatpush1.msra.mxu0 0.0
    %1061 = vmatprep.subr.mxu0 0.0
    %1062 = vmatpush1.msra.mxu0 0.0
    %1063 = vmatprep.subr.mxu0 0.0
    %1064 = vmatpush1.msra.mxu0 0.0
    %1065 = vmatprep.subr.mxu0 0.0
    %1066 = vmatpush1.msra.mxu0 0.0
    %1067 = vmatprep.subr.mxu0 0.0
    %1068 = vmatpush1.msra.mxu0 0.0
    %1069 = vmatprep.mubr.f32.mxu0 0.0
    %1070 = vmatmul.mubr.f32.gmra.mrb[0].mxu0 %v1000
    %v1071 = vpop.f32.mrb[0].mxu0
    %v1072 = vadd.f32 0.0, %v1071
    %v1073 = vpop.f32.mrb[0].mxu0
    %1074 = vmatprep.mubr.f32.mxu0 0.0
    %1075 = vmatmul.mubr.f32.gmra.mrb[0].mxu0 %v1003
    %v1076 = vpop.f32.mrb[0].mxu0
    %v1077 = vadd.f32 0.0, %v1076
    %v1078 = vpop.f32.mrb[0].mxu0
    %1079 = vdwg.mxu0
    %v1080 = vadd.f32 %v269, %v1072
    %v1081 = vadd.f32 %v274, %v1077
    %v1082 = vadd.f32 %v1080, %v367
    %v1083 = vadd.f32 %v1081, %v367
    %v1084 = vtanh.pop %v1082
    %v1085 = vtanh.pop %v1083
    %s1086 = scalar_lea.vmem %s1, 112
    %v1087 = vld [vmem:[%s1086] sm:$0xff]
    %v1088 = vld [vmem:[%s1086 + $0x8] sm:$0xff]
    %1090 = vset.pattern.permute.xlu0 0
    %1091 = vperm.xlu0 %1090, %v1087
    %v1092 = vpop.permute.xlu0 %1091
    %1095 = vset.pattern.permute.xlu0 0
    %1096 = vperm.xlu0 %1095, %v1088
    %v1097 = vpop.permute.xlu0 %1096
    %v1099 = vmul.f32 %v1084, %v1092
    %v1100 = vmul.f32 %v1085, %v1097
    %v1101 = vld [vmem:[%s7] sm:$0xff]
    %v1102 = vld [vmem:[%s7 + $0x8] sm:$0xff]
    %v1103 = vld [vmem:[%s7 + $0x10] sm:$0xff]
    %v1104 = vld [vmem:[%s7 + $0x18] sm:$0xff]
    %v1106 = vsel %vm282, %v385, 0
    %v1109 = vsel %vm282, %v386, 0
    %v1112 = vsel %vm282, %v487, 0
    %v1115 = vsel %vm282, %v488, 0
    %v1118 = vsel %vm282, %v589, 0
    %v1121 = vsel %vm282, %v590, 0
    %v1124 = vsel %vm282, %v691, 0
    %v1127 = vsel %vm282, %v692, 0
    %v1130 = vsel %vm282, %v793, 0
    %v1133 = vsel %vm282, %v794, 0
    %v1136 = vsel %vm282, %v895, 0
    %v1139 = vsel %vm282, %v896, 0
    %v1142 = vsel %vm282, %v997, 0
    %v1145 = vsel %vm282, %v998, 0
    %v1148 = vsel %vm282, %v1099, 0
    %v1151 = vsel %vm282, %v1100, 0
    %1153 = vmatprep.subr.mxu0 0.0
    %1154 = vmatpush1.msra.mxu0 %v1101
    %1155 = vmatprep.subr.mxu0 0.0
    %1156 = vmatpush1.msra.mxu0 %v1102
    %1157 = vmatprep.subr.mxu0 0.0
    %1158 = vmatpush1.msra.mxu0 %v1103
    %1159 = vmatprep.subr.mxu0 0.0
    %1160 = vmatpush1.msra.mxu0 %v1104
    %1161 = vmatprep.subr.mxu0 0.0
    %1162 = vmatpush1.msra.mxu0 0.0
    %1163 = vmatprep.subr.mxu0 0.0
    %1164 = vmatpush1.msra.mxu0 0.0
    %1165 = vmatprep.subr.mxu0 0.0
    %1166 = vmatpush1.msra.mxu0 0.0
    %1167 = vmatprep.subr.mxu0 0.0
    %1168 = vmatpush1.msra.mxu0 0.0
    %1169 = vmatprep.subr.mxu0 0.0
    %1170 = vmatpush1.msra.mxu0 0.0
    %1171 = vmatprep.subr.mxu0 0.0
    %1172 = vmatpush1.msra.mxu0 0.0
    %1173 = vmatprep.subr.mxu0 0.0
    %1174 = vmatpush1.msra.mxu0 0.0
    %1175 = vmatprep.subr.mxu0 0.0
    %1176 = vmatpush1.msra.mxu0 0.0
    %1177 = vmatprep.subr.mxu0 0.0
    %1178 = vmatpush1.msra.mxu0 0.0
    %1179 = vmatprep.subr.mxu0 0.0
    %1180 = vmatpush1.msra.mxu0 0.0
    %1181 = vmatprep.subr.mxu0 0.0
    %1182 = vmatpush1.msra.mxu0 0.0
    %1183 = vmatprep.subr.mxu0 0.0
    %1184 = vmatpush1.msra.mxu0 0.0
    %1185 = vmatprep.subr.mxu0 0.0
    %1186 = vmatpush1.msra.mxu0 0.0
    %1187 = vmatprep.subr.mxu0 0.0
    %1188 = vmatpush1.msra.mxu0 0.0
    %1189 = vmatprep.subr.mxu0 0.0
    %1190 = vmatpush1.msra.mxu0 0.0
    %1191 = vmatprep.subr.mxu0 0.0
    %1192 = vmatpush1.msra.mxu0 0.0
    %1193 = vmatprep.subr.mxu0 0.0
    %1194 = vmatpush1.msra.mxu0 0.0
    %1195 = vmatprep.subr.mxu0 0.0
    %1196 = vmatpush1.msra.mxu0 0.0
    %1197 = vmatprep.subr.mxu0 0.0
    %1198 = vmatpush1.msra.mxu0 0.0
    %1199 = vmatprep.subr.mxu0 0.0
    %1200 = vmatpush1.msra.mxu0 0.0
    %1201 = vmatprep.subr.mxu0 0.0
    %1202 = vmatpush1.msra.mxu0 0.0
    %1203 = vmatprep.subr.mxu0 0.0
    %1204 = vmatpush1.msra.mxu0 0.0
    %1205 = vmatprep.subr.mxu0 0.0
    %1206 = vmatpush1.msra.mxu0 0.0
    %1207 = vmatprep.subr.mxu0 0.0
    %1208 = vmatpush1.msra.mxu0 0.0
    %1209 = vmatprep.subr.mxu0 0.0
    %1210 = vmatpush1.msra.mxu0 0.0
    %1211 = vmatprep.subr.mxu0 0.0
    %1212 = vmatpush1.msra.mxu0 0.0
    %1213 = vmatprep.subr.mxu0 0.0
    %1214 = vmatpush1.msra.mxu0 0.0
    %1215 = vmatprep.subr.mxu0 0.0
    %1216 = vmatpush1.msra.mxu0 0.0
    %1217 = vmatprep.mubr.f32.mxu0 0.0
    %1218 = vmatmul.mubr.f32.gmra.mrb[0].mxu0 %v1106
    %v1219 = vpop.f32.mrb[0].mxu0
    %v1220 = vadd.f32 0.0, %v1219
    %v1221 = vpop.f32.mrb[0].mxu0
    %1222 = vmatprep.mubr.f32.mxu0 0.0
    %1223 = vmatmul.mubr.f32.gmra.mrb[0].mxu0 %v1109
    %v1224 = vpop.f32.mrb[0].mxu0
    %v1225 = vadd.f32 0.0, %v1224
    %v1226 = vpop.f32.mrb[0].mxu0
    %1227 = vmatprep.mubr.f32.mxu0 0.0
    %1228 = vmatmul.mubr.f32.gmra.mrb[0].mxu0 %v1112
    %v1229 = vpop.f32.mrb[0].mxu0
    %v1230 = vadd.f32 0.0, %v1229
    %v1231 = vpop.f32.mrb[0].mxu0
    %1232 = vmatprep.mubr.f32.mxu0 0.0
    %1233 = vmatmul.mubr.f32.gmra.mrb[0].mxu0 %v1115
    %v1234 = vpop.f32.mrb[0].mxu0
    %v1235 = vadd.f32 0.0, %v1234
    %v1236 = vpop.f32.mrb[0].mxu0
    %1237 = vmatprep.mubr.f32.mxu0 0.0
    %1238 = vmatmul.mubr.f32.gmra.mrb[0].mxu0 %v1118
    %v1239 = vpop.f32.mrb[0].mxu0
    %v1240 = vadd.f32 0.0, %v1239
    %v1241 = vpop.f32.mrb[0].mxu0
    %1242 = vmatprep.mubr.f32.mxu0 0.0
    %1243 = vmatmul.mubr.f32.gmra.mrb[0].mxu0 %v1121
    %v1244 = vpop.f32.mrb[0].mxu0
    %v1245 = vadd.f32 0.0, %v1244
    %v1246 = vpop.f32.mrb[0].mxu0
    %1247 = vmatprep.mubr.f32.mxu0 0.0
    %1248 = vmatmul.mubr.f32.gmra.mrb[0].mxu0 %v1124
    %v1249 = vpop.f32.mrb[0].mxu0
    %v1250 = vadd.f32 0.0, %v1249
    %v1251 = vpop.f32.mrb[0].mxu0
    %1252 = vmatprep.mubr.f32.mxu0 0.0
    %1253 = vmatmul.mubr.f32.gmra.mrb[0].mxu0 %v1127
    %v1254 = vpop.f32.mrb[0].mxu0
    %v1255 = vadd.f32 0.0, %v1254
    %v1256 = vpop.f32.mrb[0].mxu0
    %1257 = vmatprep.mubr.f32.mxu0 0.0
    %1258 = vmatmul.mubr.f32.gmra.mrb[0].mxu0 %v1130
    %v1259 = vpop.f32.mrb[0].mxu0
    %v1260 = vadd.f32 0.0, %v1259
    %v1261 = vpop.f32.mrb[0].mxu0
    %1262 = vmatprep.mubr.f32.mxu0 0.0
    %1263 = vmatmul.mubr.f32.gmra.mrb[0].mxu0 %v1133
    %v1264 = vpop.f32.mrb[0].mxu0
    %v1265 = vadd.f32 0.0, %v1264
    %v1266 = vpop.f32.mrb[0].mxu0
    %1267 = vmatprep.mubr.f32.mxu0 0.0
    %1268 = vmatmul.mubr.f32.gmra.mrb[0].mxu0 %v1136
    %v1269 = vpop.f32.mrb[0].mxu0
    %v1270 = vadd.f32 0.0, %v1269
    %v1271 = vpop.f32.mrb[0].mxu0
    %1272 = vmatprep.mubr.f32.mxu0 0.0
    %1273 = vmatmul.mubr.f32.gmra.mrb[0].mxu0 %v1139
    %v1274 = vpop.f32.mrb[0].mxu0
    %v1275 = vadd.f32 0.0, %v1274
    %v1276 = vpop.f32.mrb[0].mxu0
    %1277 = vmatprep.mubr.f32.mxu0 0.0
    %1278 = vmatmul.mubr.f32.gmra.mrb[0].mxu0 %v1142
    %v1279 = vpop.f32.mrb[0].mxu0
    %v1280 = vadd.f32 0.0, %v1279
    %v1281 = vpop.f32.mrb[0].mxu0
    %1282 = vmatprep.mubr.f32.mxu0 0.0
    %1283 = vmatmul.mubr.f32.gmra.mrb[0].mxu0 %v1145
    %v1284 = vpop.f32.mrb[0].mxu0
    %v1285 = vadd.f32 0.0, %v1284
    %v1286 = vpop.f32.mrb[0].mxu0
    %1287 = vmatprep.mubr.f32.mxu0 0.0
    %1288 = vmatmul.mubr.f32.gmra.mrb[0].mxu0 %v1148
    %v1289 = vpop.f32.mrb[0].mxu0
    %v1290 = vadd.f32 0.0, %v1289
    %v1291 = vpop.f32.mrb[0].mxu0
    %1292 = vmatprep.mubr.f32.mxu0 0.0
    %1293 = vmatmul.mubr.f32.gmra.mrb[0].mxu0 %v1151
    %v1294 = vpop.f32.mrb[0].mxu0
    %v1295 = vadd.f32 0.0, %v1294
    %v1296 = vpop.f32.mrb[0].mxu0
    %1297 = vdwg.mxu0
    %v1298 = vld [vmem:[%s2] sm:$0xff]
    %v1299 = vld [vmem:[%s2 + $0x8] sm:$0xff]
    %vm1300 = vcmp.eq.f32.partialorder %v1298, 0.0
    %vm1301 = vcmp.eq.f32.partialorder %v1299, 0.0
    %v1302 = vsel %vm1300, -1e+09, %v1220
    %v1303 = vsel %vm1301, -1e+09, %v1225
    %s1304 = scalar_lea.vmem %s2, 16
    %v1305 = vld [vmem:[%s1304] sm:$0xff]
    %v1306 = vld [vmem:[%s1304 + $0x8] sm:$0xff]
    %vm1307 = vcmp.eq.f32.partialorder %v1305, 0.0
    %vm1308 = vcmp.eq.f32.partialorder %v1306, 0.0
    %v1309 = vsel %vm1307, -1e+09, %v1230
    %v1310 = vsel %vm1308, -1e+09, %v1235
    %s1311 = scalar_lea.vmem %s2, 32
    %v1312 = vld [vmem:[%s1311] sm:$0xff]
    %v1313 = vld [vmem:[%s1311 + $0x8] sm:$0xff]
    %vm1314 = vcmp.eq.f32.partialorder %v1312, 0.0
    %vm1315 = vcmp.eq.f32.partialorder %v1313, 0.0
    %v1316 = vsel %vm1314, -1e+09, %v1240
    %v1317 = vsel %vm1315, -1e+09, %v1245
    %s1318 = scalar_lea.vmem %s2, 48
    %v1319 = vld [vmem:[%s1318] sm:$0xff]
    %v1320 = vld [vmem:[%s1318 + $0x8] sm:$0xff]
    %vm1321 = vcmp.eq.f32.partialorder %v1319, 0.0
    %vm1322 = vcmp.eq.f32.partialorder %v1320, 0.0
    %v1323 = vsel %vm1321, -1e+09, %v1250
    %v1324 = vsel %vm1322, -1e+09, %v1255
    %s1325 = scalar_lea.vmem %s2, 64
    %v1326 = vld [vmem:[%s1325] sm:$0xff]
    %v1327 = vld [vmem:[%s1325 + $0x8] sm:$0xff]
    %vm1328 = vcmp.eq.f32.partialorder %v1326, 0.0
    %vm1329 = vcmp.eq.f32.partialorder %v1327, 0.0
    %v1330 = vsel %vm1328, -1e+09, %v1260
    %v1331 = vsel %vm1329, -1e+09, %v1265
    %s1332 = scalar_lea.vmem %s2, 80
    %v1333 = vld [vmem:[%s1332] sm:$0xff]
    %v1334 = vld [vmem:[%s1332 + $0x8] sm:$0xff]
    %vm1335 = vcmp.eq.f32.partialorder %v1333, 0.0
    %vm1336 = vcmp.eq.f32.partialorder %v1334, 0.0
    %v1337 = vsel %vm1335, -1e+09, %v1270
    %v1338 = vsel %vm1336, -1e+09, %v1275
    %s1339 = scalar_lea.vmem %s2, 96
    %v1340 = vld [vmem:[%s1339] sm:$0xff]
    %v1341 = vld [vmem:[%s1339 + $0x8] sm:$0xff]
    %vm1342 = vcmp.eq.f32.partialorder %v1340, 0.0
    %vm1343 = vcmp.eq.f32.partialorder %v1341, 0.0
    %v1344 = vsel %vm1342, -1e+09, %v1280
    %v1345 = vsel %vm1343, -1e+09, %v1285
    %s1346 = scalar_lea.vmem %s2, 112
    %v1347 = vld [vmem:[%s1346] sm:$0xff]
    %v1348 = vld [vmem:[%s1346 + $0x8] sm:$0xff]
    %vm1349 = vcmp.eq.f32.partialorder %v1347, 0.0
    %vm1350 = vcmp.eq.f32.partialorder %v1348, 0.0
    %v1351 = vsel %vm1349, -1e+09, %v1290
    %v1352 = vsel %vm1350, -1e+09, %v1295
    %v1353 = vmax.f32 %v1302, %v1309
    %v1354 = vmax.f32 %v1303, %v1310
    %v1355 = vmax.f32 %v1353, %v1316
    %v1356 = vmax.f32 %v1354, %v1317
    %v1357 = vmax.f32 %v1355, %v1323
    %v1358 = vmax.f32 %v1356, %v1324
    %v1359 = vmax.f32 %v1357, %v1330
    %v1360 = vmax.f32 %v1358, %v1331
    %v1361 = vmax.f32 %v1359, %v1337
    %v1362 = vmax.f32 %v1360, %v1338
    %v1363 = vmax.f32 %v1361, %v1344
    %v1364 = vmax.f32 %v1362, %v1345
    %v1365 = vmax.f32 %v1363, %v1351
    %v1366 = vmax.f32 %v1364, %v1352
    %v1367 = vsub.f32 %v1302, %v1365
    %v1368 = vsub.f32 %v1303, %v1366
    %v1369 = vmul.f32 %v1367, 1.442695
    %v1370 = vpow.pop %v1369
    %v1371 = vmul.f32 %v1368, 1.442695
    %v1372 = vpow.pop %v1371
    %v1373 = vsub.f32 %v1309, %v1365
    %v1374 = vsub.f32 %v1310, %v1366
    %v1375 = vmul.f32 %v1373, 1.442695
    %v1376 = vpow.pop %v1375
    %v1377 = vmul.f32 %v1374, 1.442695
    %v1378 = vpow.pop %v1377
    %v1379 = vsub.f32 %v1316, %v1365
    %v1380 = vsub.f32 %v1317, %v1366
    %v1381 = vmul.f32 %v1379, 1.442695
    %v1382 = vpow.pop %v1381
    %v1383 = vmul.f32 %v1380, 1.442695
    %v1384 = vpow.pop %v1383
    %v1385 = vsub.f32 %v1323, %v1365
    %v1386 = vsub.f32 %v1324, %v1366
    %v1387 = vmul.f32 %v1385, 1.442695
    %v1388 = vpow.pop %v1387
    %v1389 = vmul.f32 %v1386, 1.442695
    %v1390 = vpow.pop %v1389
    %v1391 = vsub.f32 %v1330, %v1365
    %v1392 = vsub.f32 %v1331, %v1366
    %v1393 = vmul.f32 %v1391, 1.442695
    %v1394 = vpow.pop %v1393
    %v1395 = vmul.f32 %v1392, 1.442695
    %v1396 = vpow.pop %v1395
    %v1397 = vsub.f32 %v1337, %v1365
    %v1398 = vsub.f32 %v1338, %v1366
    %v1399 = vmul.f32 %v1397, 1.442695
    %v1400 = vpow.pop %v1399
    %v1401 = vmul.f32 %v1398, 1.442695
    %v1402 = vpow.pop %v1401
    %v1403 = vsub.f32 %v1344, %v1365
    %v1404 = vsub.f32 %v1345, %v1366
    %v1405 = vmul.f32 %v1403, 1.442695
    %v1406 = vpow.pop %v1405
    %v1407 = vmul.f32 %v1404, 1.442695
    %v1408 = vpow.pop %v1407
    %v1409 = vsub.f32 %v1351, %v1365
    %v1410 = vsub.f32 %v1352, %v1366
    %v1411 = vmul.f32 %v1409, 1.442695
    %v1412 = vpow.pop %v1411
    %v1413 = vmul.f32 %v1410, 1.442695
    %v1414 = vpow.pop %v1413
    %v1415 = vadd.f32 %v1370, %v1376
    %v1416 = vadd.f32 %v1372, %v1378
    %v1417 = vadd.f32 %v1415, %v1382
    %v1418 = vadd.f32 %v1416, %v1384
    %v1419 = vadd.f32 %v1417, %v1388
    %v1420 = vadd.f32 %v1418, %v1390
    %v1421 = vadd.f32 %v1419, %v1394
    %v1422 = vadd.f32 %v1420, %v1396
    %v1423 = vadd.f32 %v1421, %v1400
    %v1424 = vadd.f32 %v1422, %v1402
    %v1425 = vadd.f32 %v1423, %v1406
    %v1426 = vadd.f32 %v1424, %v1408
    %v1427 = vadd.f32 %v1425, %v1412
    %v1428 = vadd.f32 %v1426, %v1414
    %v1429 = vrcp.pop %v1427
    %v1430 = vrcp.pop %v1428
    %v1431 = vmul.f32 %v1370, %v1429
    %v1432 = vmul.f32 %v1372, %v1430
    %v1433 = vmul.f32 %v1376, %v1429
    %v1434 = vmul.f32 %v1378, %v1430
    %v1435 = vmul.f32 %v1382, %v1429
    %v1436 = vmul.f32 %v1384, %v1430
    %v1437 = vmul.f32 %v1388, %v1429
    %v1438 = vmul.f32 %v1390, %v1430
    %v1439 = vmul.f32 %v1394, %v1429
    %v1440 = vmul.f32 %v1396, %v1430
    %v1441 = vmul.f32 %v1400, %v1429
    %v1442 = vmul.f32 %v1402, %v1430
    %v1443 = vmul.f32 %v1406, %v1429
    %v1444 = vmul.f32 %v1408, %v1430
    %v1445 = vmul.f32 %v1412, %v1429
    %v1446 = vmul.f32 %v1414, %v1430
    %1449 = vrot.lane.b32.xlu0 %v1433, 1
    %v1450 = vpop.permute.xlu0 %1449
    %1451 = vrot.lane.b32.xlu0 %v1434, 1
    %v1452 = vpop.permute.xlu0 %1451
    %1457 = vrot.lane.b32.xlu0 %v1435, 2
    %v1458 = vpop.permute.xlu0 %1457
    %1459 = vrot.lane.b32.xlu0 %v1436, 2
    %v1460 = vpop.permute.xlu0 %1459
    %1465 = vrot.lane.b32.xlu0 %v1437, 3
    %v1466 = vpop.permute.xlu0 %1465
    %1467 = vrot.lane.b32.xlu0 %v1438, 3
    %v1468 = vpop.permute.xlu0 %1467
    %1473 = vrot.lane.b32.xlu0 %v1439, 4
    %v1474 = vpop.permute.xlu0 %1473
    %1475 = vrot.lane.b32.xlu0 %v1440, 4
    %v1476 = vpop.permute.xlu0 %1475
    %1481 = vrot.lane.b32.xlu0 %v1441, 5
    %v1482 = vpop.permute.xlu0 %1481
    %1483 = vrot.lane.b32.xlu0 %v1442, 5
    %v1484 = vpop.permute.xlu0 %1483
    %1489 = vrot.lane.b32.xlu0 %v1443, 6
    %v1490 = vpop.permute.xlu0 %1489
    %1491 = vrot.lane.b32.xlu0 %v1444, 6
    %v1492 = vpop.permute.xlu0 %1491
    %1497 = vrot.lane.b32.xlu0 %v1445, 7
    %v1498 = vpop.permute.xlu0 %1497
    %1499 = vrot.lane.b32.xlu0 %v1446, 7
    %v1500 = vpop.permute.xlu0 %1499
    %vm1503 = vcmask 7168
    %v1504 = vsel %vm1503, %v1431, %v1450
    %v1505 = vsel %vm1503, %v1432, %v1452
    %vm1506 = vcmask 15360
    %v1507 = vsel %vm1506, %v1504, %v1458
    %v1508 = vsel %vm1506, %v1505, %v1460
    %vm1509 = vcmask 23552
    %v1510 = vsel %vm1509, %v1507, %v1466
    %v1511 = vsel %vm1509, %v1508, %v1468
    %vm1512 = vcmask 31744
    %v1513 = vsel %vm1512, %v1510, %v1474
    %v1514 = vsel %vm1512, %v1511, %v1476
    %vm1515 = vcmask 39936
    %v1516 = vsel %vm1515, %v1513, %v1482
    %v1517 = vsel %vm1515, %v1514, %v1484
    %vm1518 = vcmask 48128
    %v1519 = vsel %vm1518, %v1516, %v1490
    %v1520 = vsel %vm1518, %v1517, %v1492
    %vm1521 = vcmask 56320
    %v1522 = vsel %vm1521, %v1519, %v1498
    %v1523 = vsel %vm1521, %v1520, %v1500
    %vm1524 = vcmask 64512
    %1525 = vst.msk [vmem:[%s16] sm:$0xff] %vm1524, %v1522
    %1526 = vst.msk [vmem:[%s16 + $0x8] sm:$0xff] %vm1524, %v1523
    %1528 = vset.pattern.permute.xlu0 0
    %1529 = vperm.xlu0 %1528, %v1431
    %v1530 = vpop.permute.xlu0 %1529
    %1533 = vset.pattern.permute.xlu0 0
    %1534 = vperm.xlu0 %1533, %v1432
    %v1535 = vpop.permute.xlu0 %1534
    %v1537 = vmul.f32 %v385, %v1530
    %v1538 = vmul.f32 %v386, %v1535
    %1539 = vset.pattern.permute.xlu0 0
    %1540 = vperm.xlu0 %1539, %v1433
    %v1541 = vpop.permute.xlu0 %1540
    %1543 = vset.pattern.permute.xlu0 0
    %1544 = vperm.xlu0 %1543, %v1434
    %v1545 = vpop.permute.xlu0 %1544
    %v1547 = vmul.f32 %v487, %v1541
    %v1548 = vmul.f32 %v488, %v1545
    %v1549 = vadd.f32 %v1537, %v1547
    %v1550 = vadd.f32 %v1538, %v1548
    %1551 = vset.pattern.permute.xlu0 0
    %1552 = vperm.xlu0 %1551, %v1435
    %v1553 = vpop.permute.xlu0 %1552
    %1555 = vset.pattern.permute.xlu0 0
    %1556 = vperm.xlu0 %1555, %v1436
    %v1557 = vpop.permute.xlu0 %1556
    %v1559 = vmul.f32 %v589, %v1553
    %v1560 = vmul.f32 %v590, %v1557
    %v1561 = vadd.f32 %v1549, %v1559
    %v1562 = vadd.f32 %v1550, %v1560
    %1563 = vset.pattern.permute.xlu0 0
    %1564 = vperm.xlu0 %1563, %v1437
    %v1565 = vpop.permute.xlu0 %1564
    %1567 = vset.pattern.permute.xlu0 0
    %1568 = vperm.xlu0 %1567, %v1438
    %v1569 = vpop.permute.xlu0 %1568
    %v1571 = vmul.f32 %v691, %v1565
    %v1572 = vmul.f32 %v692, %v1569
    %v1573 = vadd.f32 %v1561, %v1571
    %v1574 = vadd.f32 %v1562, %v1572
    %1575 = vset.pattern.permute.xlu0 0
    %1576 = vperm.xlu0 %1575, %v1439
    %v1577 = vpop.permute.xlu0 %1576
    %1579 = vset.pattern.permute.xlu0 0
    %1580 = vperm.xlu0 %1579, %v1440
    %v1581 = vpop.permute.xlu0 %1580
    %v1583 = vmul.f32 %v793, %v1577
    %v1584 = vmul.f32 %v794, %v1581
    %v1585 = vadd.f32 %v1573, %v1583
    %v1586 = vadd.f32 %v1574, %v1584
    %1587 = vset.pattern.permute.xlu0 0
    %1588 = vperm.xlu0 %1587, %v1441
    %v1589 = vpop.permute.xlu0 %1588
    %1591 = vset.pattern.permute.xlu0 0
    %1592 = vperm.xlu0 %1591, %v1442
    %v1593 = vpop.permute.xlu0 %1592
    %v1595 = vmul.f32 %v895, %v1589
    %v1596 = vmul.f32 %v896, %v1593
    %v1597 = vadd.f32 %v1585, %v1595
    %v1598 = vadd.f32 %v1586, %v1596
    %1599 = vset.pattern.permute.xlu0 0
    %1600 = vperm.xlu0 %1599, %v1443
    %v1601 = vpop.permute.xlu0 %1600
    %1603 = vset.pattern.permute.xlu0 0
    %1604 = vperm.xlu0 %1603, %v1444
    %v1605 = vpop.permute.xlu0 %1604
    %v1607 = vmul.f32 %v997, %v1601
    %v1608 = vmul.f32 %v998, %v1605
    %v1609 = vadd.f32 %v1597, %v1607
    %v1610 = vadd.f32 %v1598, %v1608
    %1611 = vset.pattern.permute.xlu0 0
    %1612 = vperm.xlu0 %1611, %v1445
    %v1613 = vpop.permute.xlu0 %1612
    %1615 = vset.pattern.permute.xlu0 0
    %1616 = vperm.xlu0 %1615, %v1446
    %v1617 = vpop.permute.xlu0 %1616
    %v1619 = vmul.f32 %v1099, %v1613
    %v1620 = vmul.f32 %v1100, %v1617
    %v1621 = vadd.f32 %v1609, %v1619
    %v1622 = vadd.f32 %v1610, %v1620
    %s1623 = smul.u32 0, 16
    %s1624 = scalar_lea.vmem [#allocation2], %s1623
    %1625 = vst.msk [vmem:[%s1624] sm:$0xff] %vm282, %v1621
    %1626 = vst.msk [vmem:[%s1624 + $0x8] sm:$0xff] %vm282, %v1622
    %p1627 = scmp.eq.s32.totalorder 0, 0
    // Predicated region
    $region66: #{tpu_custom_call.1} parent=1 // pred_check
      %p1628 = pneg %p1627
    $region67: #{tpu_custom_call.1} parent=1 // pred_check_branch
      %1630 = sbr.rel (%p1628) target = $region69
    $region68: #{tpu_custom_call.1} parent=1 // pred_region
      %v1631 = vld [vmem:[#allocation2] sm:$0xff]
      %v1632 = vld [vmem:[#allocation2 + $0x8] sm:$0xff]
      %v1633 = vld [vmem:[%s8] sm:$0xff]
      %v1634 = vld [vmem:[%s8 + $0x8] sm:$0xff]
      %v1635 = vld [vmem:[%s8 + $0x10] sm:$0xff]
      %v1636 = vld [vmem:[%s8 + $0x18] sm:$0xff]
      %v1638 = vsel %vm282, %v1631, 0
      %v1641 = vsel %vm282, %v1632, 0
      %1643 = vmatprep.subr.mxu0 0.0
      %1644 = vmatpush1.msra.mxu0 %v1633
      %1645 = vmatprep.subr.mxu0 0.0
      %1646 = vmatpush1.msra.mxu0 %v1634
      %1647 = vmatprep.subr.mxu0 0.0
      %1648 = vmatpush1.msra.mxu0 %v1635
      %1649 = vmatprep.subr.mxu0 0.0
      %1650 = vmatpush1.msra.mxu0 %v1636
      %1651 = vmatprep.subr.mxu0 0.0
      %1652 = vmatpush1.msra.mxu0 0.0
      %1653 = vmatprep.subr.mxu0 0.0
      %1654 = vmatpush1.msra.mxu0 0.0
      %1655 = vmatprep.subr.mxu0 0.0
      %1656 = vmatpush1.msra.mxu0 0.0
      %1657 = vmatprep.subr.mxu0 0.0
      %1658 = vmatpush1.msra.mxu0 0.0
      %1659 = vmatprep.subr.mxu0 0.0
      %1660 = vmatpush1.msra.mxu0 0.0
      %1661 = vmatprep.subr.mxu0 0.0
      %1662 = vmatpush1.msra.mxu0 0.0
      %1663 = vmatprep.subr.mxu0 0.0
      %1664 = vmatpush1.msra.mxu0 0.0
      %1665 = vmatprep.subr.mxu0 0.0
      %1666 = vmatpush1.msra.mxu0 0.0
      %1667 = vmatprep.subr.mxu0 0.0
      %1668 = vmatpush1.msra.mxu0 0.0
      %1669 = vmatprep.subr.mxu0 0.0
      %1670 = vmatpush1.msra.mxu0 0.0
      %1671 = vmatprep.subr.mxu0 0.0
      %1672 = vmatpush1.msra.mxu0 0.0
      %1673 = vmatprep.subr.mxu0 0.0
      %1674 = vmatpush1.msra.mxu0 0.0
      %1675 = vmatprep.subr.mxu0 0.0
      %1676 = vmatpush1.msra.mxu0 0.0
      %1677 = vmatprep.subr.mxu0 0.0
      %1678 = vmatpush1.msra.mxu0 0.0
      %1679 = vmatprep.subr.mxu0 0.0
      %1680 = vmatpush1.msra.mxu0 0.0
      %1681 = vmatprep.subr.mxu0 0.0
      %1682 = vmatpush1.msra.mxu0 0.0
      %1683 = vmatprep.subr.mxu0 0.0
      %1684 = vmatpush1.msra.mxu0 0.0
      %1685 = vmatprep.subr.mxu0 0.0
      %1686 = vmatpush1.msra.mxu0 0.0
      %1687 = vmatprep.subr.mxu0 0.0
      %1688 = vmatpush1.msra.mxu0 0.0
      %1689 = vmatprep.subr.mxu0 0.0
      %1690 = vmatpush1.msra.mxu0 0.0
      %1691 = vmatprep.subr.mxu0 0.0
      %1692 = vmatpush1.msra.mxu0 0.0
      %1693 = vmatprep.subr.mxu0 0.0
      %1694 = vmatpush1.msra.mxu0 0.0
      %1695 = vmatprep.subr.mxu0 0.0
      %1696 = vmatpush1.msra.mxu0 0.0
      %1697 = vmatprep.subr.mxu0 0.0
      %1698 = vmatpush1.msra.mxu0 0.0
      %1699 = vmatprep.subr.mxu0 0.0
      %1700 = vmatpush1.msra.mxu0 0.0
      %1701 = vmatprep.subr.mxu0 0.0
      %1702 = vmatpush1.msra.mxu0 0.0
      %1703 = vmatprep.subr.mxu0 0.0
      %1704 = vmatpush1.msra.mxu0 0.0
      %1705 = vmatprep.subr.mxu0 0.0
      %1706 = vmatpush1.msra.mxu0 0.0
      %1707 = vmatprep.mubr.f32.mxu0 0.0
      %1708 = vmatmul.mubr.f32.gmra.mrb[0].mxu0 %v1638
      %v1709 = vpop.f32.mrb[0].mxu0
      %v1710 = vadd.f32 0.0, %v1709
      %v1711 = vpop.f32.mrb[0].mxu0
      %1712 = vmatprep.mubr.f32.mxu0 0.0
      %1713 = vmatmul.mubr.f32.gmra.mrb[0].mxu0 %v1641
      %v1714 = vpop.f32.mrb[0].mxu0
      %v1715 = vadd.f32 0.0, %v1714
      %v1716 = vpop.f32.mrb[0].mxu0
      %1717 = vdwg.mxu0
      %1720 = vset.pattern.permute.xlu0 0
      %1721 = vperm.xlu0 %1720, %v1710
      %v1722 = vpop.permute.xlu0 %1721
      %1723 = vset.pattern.permute.xlu0 0
      %1724 = vperm.xlu0 %1723, %v1715
      %v1725 = vpop.permute.xlu0 %1724
      %v1726 = vlaneseq
      %v1727 = vand.u32 %v1726, 127
      %v1728 = vlaneseq
      %v1729 = vshrl.u32 %v1728, 7
      %v1730 = vsub.s32 %v1727, %v1729
      %v1731 = vrot.slane %v1722, %v1730
      %v1732 = vlaneseq
      %v1733 = vshrl.u32 %v1732, 7
      %v1734 = vsub.s32 %v1727, %v1733
      %v1735 = vrot.slane %v1725, %v1734
      %vm1736 = vcmask 1041409
      %v1737 = vsel %vm1736, %v1735, %v1731
      %vm1739 = vcmask 58368
      %v1740 = vsel %vm1739, %v1737, -inf
      %1741 = vmax.xlane.f32.xlu0 %v1740
      %v1742 = vpop.xlane.xlu0 %1741
      %v1744 = vlaneseq
      %v1745 = vshrl.u32 %v1744, 7
      %v1746 = vsub.s32 0, %v1745
      %v1747 = vrot.slane %v1742, %v1746
      %v1748 = vlaneseq
      %v1749 = vshrl.u32 %v1748, 7
      %v1750 = vsub.s32 1, %v1749
      %v1751 = vrot.slane %v1742, %v1750
      %v1754 = vsub.f32 %v1710, %v1747
      %v1755 = vsub.f32 %v1715, %v1751
      %v1756 = vmul.f32 %v1754, 1.442695
      %v1757 = vpow.pop %v1756
      %v1758 = vmul.f32 %v1755, 1.442695
      %v1759 = vpow.pop %v1758
      %1762 = vset.pattern.permute.xlu0 0
      %1763 = vperm.xlu0 %1762, %v1757
      %v1764 = vpop.permute.xlu0 %1763
      %1765 = vset.pattern.permute.xlu0 0
      %1766 = vperm.xlu0 %1765, %v1759
      %v1767 = vpop.permute.xlu0 %1766
      %v1768 = vlaneseq
      %v1769 = vshrl.u32 %v1768, 7
      %v1770 = vsub.s32 %v1727, %v1769
      %v1771 = vrot.slane %v1764, %v1770
      %v1772 = vlaneseq
      %v1773 = vshrl.u32 %v1772, 7
      %v1774 = vsub.s32 %v1727, %v1773
      %v1775 = vrot.slane %v1767, %v1774
      %v1776 = vsel %vm1736, %v1775, %v1771
      %v1778 = vsel %vm1739, %v1776, 0.0
      %1779 = vadd.xlane.f32.xlu0 %v1778
      %v1780 = vpop.xlane.xlu0 %1779
      %v1781 = vrcp.pop %v1780
      %v1783 = vlaneseq
      %v1784 = vshrl.u32 %v1783, 7
      %v1785 = vsub.s32 0, %v1784
      %v1786 = vrot.slane %v1781, %v1785
      %v1787 = vlaneseq
      %v1788 = vshrl.u32 %v1787, 7
      %v1789 = vsub.s32 1, %v1788
      %v1790 = vrot.slane %v1781, %v1789
      %v1793 = vmul.f32 %v1757, %v1786
      %v1794 = vmul.f32 %v1759, %v1790
      %1796 = vset.pattern.permute.xlu0 0
      %1797 = vperm.xlu0 %1796, %v1793
      %v1798 = vpop.permute.xlu0 %1797
      %1801 = vset.pattern.permute.xlu0 0
      %1802 = vperm.xlu0 %1801, %v1794
      %v1803 = vpop.permute.xlu0 %1802
      %v1805 = vmul.f32 %v1631, %v1798
      %v1806 = vmul.f32 %v1632, %v1803
      %v1807 = vsel %vm282, %v1805, 0.0
      %v1808 = vrot.slane %v1807, 4
      %v1809 = vadd.f32 %v1807, %v1808
      %v1810 = vrot.slane %v1809, 2
      %v1811 = vadd.f32 %v1809, %v1810
      %v1812 = vrot.slane %v1811, 1
      %v1813 = vadd.f32 %v1811, %v1812
      %v1814 = vsel %vm282, %v1806, 0.0
      %v1815 = vrot.slane %v1814, 4
      %v1816 = vadd.f32 %v1814, %v1815
      %v1817 = vrot.slane %v1816, 2
      %v1818 = vadd.f32 %v1816, %v1817
      %v1819 = vrot.slane %v1818, 1
      %v1820 = vadd.f32 %v1818, %v1819
      %v1821 = vld [vmem:[%s9] sm:$0xff]
      %v1822 = vld [vmem:[%s9 + $0x8] sm:$0xff]
      %v1823 = vld [vmem:[%s9 + $0x10] sm:$0xff]
      %v1824 = vld [vmem:[%s9 + $0x18] sm:$0xff]
      %v1825 = vld [vmem:[%s10] sm:$0x1]
      %v1827 = vlaneseq
      %v1828 = vshrl.u32 %v1827, 7
      %v1829 = vsub.s32 0, %v1828
      %v1830 = vrot.slane %v1825, %v1829
      %v1834 = vsel %vm1736, %v1820, %v1813
      %v1835 = vsel %vm282, %v1834, 0
      %1837 = vmatprep.subr.mxu0 0.0
      %1838 = vmatpush1.msra.mxu0 %v1821
      %1839 = vmatprep.subr.mxu0 0.0
      %1840 = vmatpush1.msra.mxu0 %v1822
      %1841 = vmatprep.subr.mxu0 0.0
      %1842 = vmatpush1.msra.mxu0 %v1823
      %1843 = vmatprep.subr.mxu0 0.0
      %1844 = vmatpush1.msra.mxu0 %v1824
      %1845 = vmatprep.subr.mxu0 0.0
      %1846 = vmatpush1.msra.mxu0 0.0
      %1847 = vmatprep.subr.mxu0 0.0
      %1848 = vmatpush1.msra.mxu0 0.0
      %1849 = vmatprep.subr.mxu0 0.0
      %1850 = vmatpush1.msra.mxu0 0.0
      %1851 = vmatprep.subr.mxu0 0.0
      %1852 = vmatpush1.msra.mxu0 0.0
      %1853 = vmatprep.subr.mxu0 0.0
      %1854 = vmatpush1.msra.mxu0 0.0
      %1855 = vmatprep.subr.mxu0 0.0
      %1856 = vmatpush1.msra.mxu0 0.0
      %1857 = vmatprep.subr.mxu0 0.0
      %1858 = vmatpush1.msra.mxu0 0.0
      %1859 = vmatprep.subr.mxu0 0.0
      %1860 = vmatpush1.msra.mxu0 0.0
      %1861 = vmatprep.subr.mxu0 0.0
      %1862 = vmatpush1.msra.mxu0 0.0
      %1863 = vmatprep.subr.mxu0 0.0
      %1864 = vmatpush1.msra.mxu0 0.0
      %1865 = vmatprep.subr.mxu0 0.0
      %1866 = vmatpush1.msra.mxu0 0.0
      %1867 = vmatprep.subr.mxu0 0.0
      %1868 = vmatpush1.msra.mxu0 0.0
      %1869 = vmatprep.subr.mxu0 0.0
      %1870 = vmatpush1.msra.mxu0 0.0
      %1871 = vmatprep.subr.mxu0 0.0
      %1872 = vmatpush1.msra.mxu0 0.0
      %1873 = vmatprep.subr.mxu0 0.0
      %1874 = vmatpush1.msra.mxu0 0.0
      %1875 = vmatprep.subr.mxu0 0.0
      %1876 = vmatpush1.msra.mxu0 0.0
      %1877 = vmatprep.subr.mxu0 0.0
      %1878 = vmatpush1.msra.mxu0 0.0
      %1879 = vmatprep.subr.mxu0 0.0
      %1880 = vmatpush1.msra.mxu0 0.0
      %1881 = vmatprep.subr.mxu0 0.0
      %1882 = vmatpush1.msra.mxu0 0.0
      %1883 = vmatprep.subr.mxu0 0.0
      %1884 = vmatpush1.msra.mxu0 0.0
      %1885 = vmatprep.subr.mxu0 0.0
      %1886 = vmatpush1.msra.mxu0 0.0
      %1887 = vmatprep.subr.mxu0 0.0
      %1888 = vmatpush1.msra.mxu0 0.0
      %1889 = vmatprep.subr.mxu0 0.0
      %1890 = vmatpush1.msra.mxu0 0.0
      %1891 = vmatprep.subr.mxu0 0.0
      %1892 = vmatpush1.msra.mxu0 0.0
      %1893 = vmatprep.subr.mxu0 0.0
      %1894 = vmatpush1.msra.mxu0 0.0
      %1895 = vmatprep.subr.mxu0 0.0
      %1896 = vmatpush1.msra.mxu0 0.0
      %1897 = vmatprep.subr.mxu0 0.0
      %1898 = vmatpush1.msra.mxu0 0.0
      %1899 = vmatprep.subr.mxu0 0.0
      %1900 = vmatpush1.msra.mxu0 0.0
      %1901 = vmatprep.mubr.f32.mxu0 0.0
      %1902 = vmatmul.mubr.f32.gmra.mrb[0].mxu0 %v1835
      %v1903 = vpop.f32.mrb[0].mxu0
      %v1904 = vadd.f32 %v1830, %v1903
      %v1905 = vpop.f32.mrb[0].mxu0
      %1906 = vdwg.mxu0
      %v1907 = vld [vmem:[%s11] sm:$0xff]
      %v1908 = vld [vmem:[%s11 + $0x8] sm:$0xff]
      %v1909 = vld [vmem:[%s11 + $0x10] sm:$0xff]
      %v1910 = vld [vmem:[%s11 + $0x18] sm:$0xff]
      %v1911 = vld [vmem:[#allocation3] sm:$0x1]
      %v1913 = vlaneseq
      %v1914 = vshrl.u32 %v1913, 7
      %v1915 = vsub.s32 0, %v1914
      %v1916 = vrot.slane %v1911, %v1915
      %v1919 = vsel %vm282, %v1904, 0
      %1921 = vmatprep.subr.mxu0 0.0
      %1922 = vmatpush1.msra.mxu0 %v1907
      %1923 = vmatprep.subr.mxu0 0.0
      %1924 = vmatpush1.msra.mxu0 %v1908
      %1925 = vmatprep.subr.mxu0 0.0
      %1926 = vmatpush1.msra.mxu0 %v1909
      %1927 = vmatprep.subr.mxu0 0.0
      %1928 = vmatpush1.msra.mxu0 %v1910
      %1929 = vmatprep.subr.mxu0 0.0
      %1930 = vmatpush1.msra.mxu0 0.0
      %1931 = vmatprep.subr.mxu0 0.0
      %1932 = vmatpush1.msra.mxu0 0.0
      %1933 = vmatprep.subr.mxu0 0.0
      %1934 = vmatpush1.msra.mxu0 0.0
      %1935 = vmatprep.subr.mxu0 0.0
      %1936 = vmatpush1.msra.mxu0 0.0
      %1937 = vmatprep.subr.mxu0 0.0
      %1938 = vmatpush1.msra.mxu0 0.0
      %1939 = vmatprep.subr.mxu0 0.0
      %1940 = vmatpush1.msra.mxu0 0.0
      %1941 = vmatprep.subr.mxu0 0.0
      %1942 = vmatpush1.msra.mxu0 0.0
      %1943 = vmatprep.subr.mxu0 0.0
      %1944 = vmatpush1.msra.mxu0 0.0
      %1945 = vmatprep.subr.mxu0 0.0
      %1946 = vmatpush1.msra.mxu0 0.0
      %1947 = vmatprep.subr.mxu0 0.0
      %1948 = vmatpush1.msra.mxu0 0.0
      %1949 = vmatprep.subr.mxu0 0.0
      %1950 = vmatpush1.msra.mxu0 0.0
      %1951 = vmatprep.subr.mxu0 0.0
      %1952 = vmatpush1.msra.mxu0 0.0
      %1953 = vmatprep.subr.mxu0 0.0
      %1954 = vmatpush1.msra.mxu0 0.0
      %1955 = vmatprep.subr.mxu0 0.0
      %1956 = vmatpush1.msra.mxu0 0.0
      %1957 = vmatprep.subr.mxu0 0.0
      %1958 = vmatpush1.msra.mxu0 0.0
      %1959 = vmatprep.subr.mxu0 0.0
      %1960 = vmatpush1.msra.mxu0 0.0
      %1961 = vmatprep.subr.mxu0 0.0
      %1962 = vmatpush1.msra.mxu0 0.0
      %1963 = vmatprep.subr.mxu0 0.0
      %1964 = vmatpush1.msra.mxu0 0.0
      %1965 = vmatprep.subr.mxu0 0.0
      %1966 = vmatpush1.msra.mxu0 0.0
      %1967 = vmatprep.subr.mxu0 0.0
      %1968 = vmatpush1.msra.mxu0 0.0
      %1969 = vmatprep.subr.mxu0 0.0
      %1970 = vmatpush1.msra.mxu0 0.0
      %1971 = vmatprep.subr.mxu0 0.0
      %1972 = vmatpush1.msra.mxu0 0.0
      %1973 = vmatprep.subr.mxu0 0.0
      %1974 = vmatpush1.msra.mxu0 0.0
      %1975 = vmatprep.subr.mxu0 0.0
      %1976 = vmatpush1.msra.mxu0 0.0
      %1977 = vmatprep.subr.mxu0 0.0
      %1978 = vmatpush1.msra.mxu0 0.0
      %1979 = vmatprep.subr.mxu0 0.0
      %1980 = vmatpush1.msra.mxu0 0.0
      %1981 = vmatprep.subr.mxu0 0.0
      %1982 = vmatpush1.msra.mxu0 0.0
      %1983 = vmatprep.subr.mxu0 0.0
      %1984 = vmatpush1.msra.mxu0 0.0
      %1985 = vmatprep.mubr.f32.mxu0 0.0
      %1986 = vmatmul.mubr.f32.gmra.mrb[0].mxu0 %v1919
      %v1987 = vpop.f32.mrb[0].mxu0
      %v1988 = vadd.f32 %v1916, %v1987
      %v1989 = vpop.f32.mrb[0].mxu0
      %1990 = vdwg.mxu0
      %v1991 = vsub.f32 0.0, %v1988
      %v1992 = vmul.f32 %v1991, 1.442695
      %v1993 = vpow.pop %v1992
      %v1994 = vadd.f32 %v1993, 1.0
      %v1995 = vrcp.pop %v1994
      %v1996 = vmul.f32 1.0, %v1995
      %v1997 = vld [vmem:[%s13] sm:$0xff]
      %v1998 = vld [vmem:[%s13 + $0x8] sm:$0xff]
      %v1999 = vld [vmem:[%s13 + $0x10] sm:$0xff]
      %v2000 = vld [vmem:[%s13 + $0x18] sm:$0xff]
      %v2001 = vld [vmem:[%s14] sm:$0x1]
      %v2003 = vsel %vm1503, %v1988, 0
      %vm2005 = vcmask 1040384
      %v2007 = vsel %vm2005, %v2001, 0
      %2009 = vmatprep.subr.mxu0 0.0
      %2010 = vmatpush1.msra.mxu0 %v2007
      %2011 = vmatprep.subr.mxu0 0.0
      %2012 = vmatpush1.msra.mxu0 0.0
      %2013 = vmatprep.subr.mxu0 0.0
      %2014 = vmatpush1.msra.mxu0 0.0
      %2015 = vmatprep.subr.mxu0 0.0
      %2016 = vmatpush1.msra.mxu0 0.0
      %2017 = vmatprep.subr.mxu0 0.0
      %2018 = vmatpush1.msra.mxu0 0.0
      %2019 = vmatprep.subr.mxu0 0.0
      %2020 = vmatpush1.msra.mxu0 0.0
      %2021 = vmatprep.subr.mxu0 0.0
      %2022 = vmatpush1.msra.mxu0 0.0
      %2023 = vmatprep.subr.mxu0 0.0
      %2024 = vmatpush1.msra.mxu0 0.0
      %2025 = vmatprep.subr.mxu0 0.0
      %2026 = vmatpush1.msra.mxu0 0.0
      %2027 = vmatprep.subr.mxu0 0.0
      %2028 = vmatpush1.msra.mxu0 0.0
      %2029 = vmatprep.subr.mxu0 0.0
      %2030 = vmatpush1.msra.mxu0 0.0
      %2031 = vmatprep.subr.mxu0 0.0
      %2032 = vmatpush1.msra.mxu0 0.0
      %2033 = vmatprep.subr.mxu0 0.0
      %2034 = vmatpush1.msra.mxu0 0.0
      %2035 = vmatprep.subr.mxu0 0.0
      %2036 = vmatpush1.msra.mxu0 0.0
      %2037 = vmatprep.subr.mxu0 0.0
      %2038 = vmatpush1.msra.mxu0 0.0
      %2039 = vmatprep.subr.mxu0 0.0
      %2040 = vmatpush1.msra.mxu0 0.0
      %2041 = vmatprep.subr.mxu0 0.0
      %2042 = vmatpush1.msra.mxu0 0.0
      %2043 = vmatprep.subr.mxu0 0.0
      %2044 = vmatpush1.msra.mxu0 0.0
      %2045 = vmatprep.subr.mxu0 0.0
      %2046 = vmatpush1.msra.mxu0 0.0
      %2047 = vmatprep.subr.mxu0 0.0
      %2048 = vmatpush1.msra.mxu0 0.0
      %2049 = vmatprep.subr.mxu0 0.0
      %2050 = vmatpush1.msra.mxu0 0.0
      %2051 = vmatprep.subr.mxu0 0.0
      %2052 = vmatpush1.msra.mxu0 0.0
      %2053 = vmatprep.subr.mxu0 0.0
      %2054 = vmatpush1.msra.mxu0 0.0
      %2055 = vmatprep.subr.mxu0 0.0
      %2056 = vmatpush1.msra.mxu0 0.0
      %2057 = vmatprep.subr.mxu0 0.0
      %2058 = vmatpush1.msra.mxu0 0.0
      %2059 = vmatprep.subr.mxu0 0.0
      %2060 = vmatpush1.msra.mxu0 0.0
      %2061 = vmatprep.subr.mxu0 0.0
      %2062 = vmatpush1.msra.mxu0 0.0
      %2063 = vmatprep.subr.mxu0 0.0
      %2064 = vmatpush1.msra.mxu0 0.0
      %2065 = vmatprep.subr.mxu0 0.0
      %2066 = vmatpush1.msra.mxu0 0.0
      %2067 = vmatprep.subr.mxu0 0.0
      %2068 = vmatpush1.msra.mxu0 0.0
      %2069 = vmatprep.subr.mxu0 0.0
      %2070 = vmatpush1.msra.mxu0 0.0
      %2071 = vmatprep.subr.mxu0 0.0
      %2072 = vmatpush1.msra.mxu0 0.0
      %2073 = vmatprep.mubr.f32.mxu0 0.0
      %2074 = vmatmul.mubr.f32.gmra.mrb[0].mxu0 %v2003
      %v2075 = vpop.f32.mrb[0].mxu0
      %v2076 = vadd.f32 0.0, %v2075
      %v2077 = vpop.f32.mrb[0].mxu0
      %2078 = vdwg.mxu0
      %2079 = vmatprep.subr.mxu0 0.0
      %2080 = vmatpush1.msra.mxu0 %v1997
      %2081 = vmatprep.subr.mxu0 0.0
      %2082 = vmatpush1.msra.mxu0 %v1998
      %2083 = vmatprep.subr.mxu0 0.0
      %2084 = vmatpush1.msra.mxu0 %v1999
      %2085 = vmatprep.subr.mxu0 0.0
      %2086 = vmatpush1.msra.mxu0 %v2000
      %2087 = vmatprep.subr.mxu0 0.0
      %2088 = vmatpush1.msra.mxu0 0.0
      %2089 = vmatprep.subr.mxu0 0.0
      %2090 = vmatpush1.msra.mxu0 0.0
      %2091 = vmatprep.subr.mxu0 0.0
      %2092 = vmatpush1.msra.mxu0 0.0
      %2093 = vmatprep.subr.mxu0 0.0
      %2094 = vmatpush1.msra.mxu0 0.0
      %2095 = vmatprep.subr.mxu0 0.0
      %2096 = vmatpush1.msra.mxu0 0.0
      %2097 = vmatprep.subr.mxu0 0.0
      %2098 = vmatpush1.msra.mxu0 0.0
      %2099 = vmatprep.subr.mxu0 0.0
      %2100 = vmatpush1.msra.mxu0 0.0
      %2101 = vmatprep.subr.mxu0 0.0
      %2102 = vmatpush1.msra.mxu0 0.0
      %2103 = vmatprep.subr.mxu0 0.0
      %2104 = vmatpush1.msra.mxu0 0.0
      %2105 = vmatprep.subr.mxu0 0.0
      %2106 = vmatpush1.msra.mxu0 0.0
      %2107 = vmatprep.subr.mxu0 0.0
      %2108 = vmatpush1.msra.mxu0 0.0
      %2109 = vmatprep.subr.mxu0 0.0
      %2110 = vmatpush1.msra.mxu0 0.0
      %2111 = vmatprep.subr.mxu0 0.0
      %2112 = vmatpush1.msra.mxu0 0.0
      %2113 = vmatprep.subr.mxu0 0.0
      %2114 = vmatpush1.msra.mxu0 0.0
      %2115 = vmatprep.subr.mxu0 0.0
      %2116 = vmatpush1.msra.mxu0 0.0
      %2117 = vmatprep.subr.mxu0 0.0
      %2118 = vmatpush1.msra.mxu0 0.0
      %2119 = vmatprep.subr.mxu0 0.0
      %2120 = vmatpush1.msra.mxu0 0.0
      %2121 = vmatprep.subr.mxu0 0.0
      %2122 = vmatpush1.msra.mxu0 0.0
      %2123 = vmatprep.subr.mxu0 0.0
      %2124 = vmatpush1.msra.mxu0 0.0
      %2125 = vmatprep.subr.mxu0 0.0
      %2126 = vmatpush1.msra.mxu0 0.0
      %2127 = vmatprep.subr.mxu0 0.0
      %2128 = vmatpush1.msra.mxu0 0.0
      %2129 = vmatprep.subr.mxu0 0.0
      %2130 = vmatpush1.msra.mxu0 0.0
      %2131 = vmatprep.subr.mxu0 0.0
      %2132 = vmatpush1.msra.mxu0 0.0
      %2133 = vmatprep.subr.mxu0 0.0
      %2134 = vmatpush1.msra.mxu0 0.0
      %2135 = vmatprep.subr.mxu0 0.0
      %2136 = vmatpush1.msra.mxu0 0.0
      %2137 = vmatprep.subr.mxu0 0.0
      %2138 = vmatpush1.msra.mxu0 0.0
      %2139 = vmatprep.subr.mxu0 0.0
      %2140 = vmatpush1.msra.mxu0 0.0
      %2141 = vmatprep.subr.mxu0 0.0
      %2142 = vmatpush1.msra.mxu0 0.0
      %2143 = vmatprep.mubr.f32.mxu0 0.0
      %2144 = vmatmul.mubr.f32.gmra.mrb[0].mxu0 %v1919
      %v2145 = vpop.f32.mrb[0].mxu0
      %v2146 = vadd.f32 %v2076, %v2145
      %v2147 = vpop.f32.mrb[0].mxu0
      %2148 = vdwg.mxu0
      %v2149 = vld [vmem:[%s15] sm:$0x1]
      %v2151 = vlaneseq
      %v2152 = vshrl.u32 %v2151, 7
      %v2153 = vsub.s32 0, %v2152
      %v2154 = vrot.slane %v2149, %v2153
      %v2156 = vadd.f32 %v2146, %v2154
      %vm2157 = vcmask 9216
      %v2158 = vsel %vm2157, %v2156, -inf
      %2159 = vmax.xlane.f32.xlu0 %v2158
      %v2160 = vpop.xlane.xlu0 %2159
      %v2161 = vsub.f32 %v2156, %v2160
      %v2162 = vmul.f32 %v2161, 1.442695
      %v2163 = vpow.pop %v2162
      %v2164 = vsel %vm2157, %v2163, 0.0
      %2165 = vadd.xlane.f32.xlu0 %v2164
      %v2166 = vpop.xlane.xlu0 %2165
      %v2167 = vrcp.pop %v2166
      %v2168 = vmul.f32 %v2163, %v2167
      %2170 = vrot.lane.b32.xlu0 %v1996, 1
      %v2171 = vpop.permute.xlu0 %2170
      %2174 = vrot.lane.b32.xlu0 %v2168, 2
      %v2175 = vpop.permute.xlu0 %2174
      %v2177 = vadd.s32 %v1727, 4294967292
      %v2178 = vlaneseq
      %v2179 = vshrl.u32 %v2178, 7
      %v2180 = vsub.s32 %v2177, %v2179
      %v2181 = vrot.slane %v1798, %v2180
      %v2182 = vlaneseq
      %v2183 = vshrl.u32 %v2182, 7
      %v2184 = vsub.s32 %v2177, %v2183
      %v2185 = vrot.slane %v1803, %v2184
      %v2186 = vsel %vm1736, %v2185, %v2181
      %v2188 = vsel %vm1503, %v1988, %v2171
      %v2189 = vsel %vm1506, %v2188, %v2175
      %v2190 = vsel %vm1512, %v2189, %v2186
      %vm2191 = vcmask 97280
      %v2192 = vsel %vm2191, %v2190, 0.0
      %2193 = vst [vmem:[#allocation4] sm:$0x3] %v2192
    $region69: #{tpu_custom_call.1} parent=1 // pred_fallthru
      _
    // Predicated region
    $region70: #{tpu_custom_call.1} parent=1 // pred_check
      _
    $region71: #{tpu_custom_call.1} parent=1 // pred_check_branch
      %2195 = sbr.rel (0) target = $region73
    $region72: #{tpu_custom_call.1} parent=1 // pred_region
      _
    $region73: #{tpu_custom_call.1} parent=1 // pred_fallthru
      _
    // Predicated region
    $region74: #{tpu_custom_call.1} parent=1 // pred_check
      _
    $region75: #{tpu_custom_call.1} parent=1 // pred_check_branch
      %2197 = sbr.rel (0) target = $region77
    $region76: #{tpu_custom_call.1} parent=1 // pred_region
      %s2199 = ssub.s32 32, 32
      %2200 = vsyncadd [#allocation5], %s2199
      %s2202 = sshll.u32 [#allocation4], 4
      %s2203 = int_to_ptr.vmem [resolvable:$true] %s2202
      %2205 = dma.vmem_to_hbm [thread:$0]  %s2203, 32, %s17, [#allocation5]
    $region77: #{tpu_custom_call.1} parent=1 // pred_fallthru
      _
    // Predicated region
    $region78: #{tpu_custom_call.1} parent=1 // pred_check
      _
    $region79: #{tpu_custom_call.1} parent=1 // pred_check_branch
      %2207 = sbr.rel (0) target = $region81
    $region80: #{tpu_custom_call.1} parent=1 // pred_region
      _
    $region81: #{tpu_custom_call.1} parent=1 // pred_fallthru
      _
    // Predicated region
    $region82: #{tpu_custom_call.1} parent=1 // pred_check
      _
    $region83: #{tpu_custom_call.1} parent=1 // pred_check_branch
      %2209 = sbr.rel (0) target = $region85
    $region84: #{tpu_custom_call.1} parent=1 // pred_region
      %2210 = dma.done [#allocation5], 32
    $region85: #{tpu_custom_call.1} parent=1 // pred_fallthru
      _
    %2211 = vsyncpa [#allocation5], 1

</llo_original>
